<compile_context>
chip_gen: v6e
topology: v6e:2x2x1
jax: 0.10.0
libtpu: 0.0.40
codegen_flags: <defaults>
</compile_context>

<pallas_src>
import functools

import jax
import jax.numpy as jnp
from jax import lax
from jax.experimental import pallas as pl
from jax.experimental.pallas import tpu as pltpu


def _round_up(x, m):
    return (x + m - 1) // m * m


def _largest_divisor_leq(n, cap):
    for c in range(min(n, cap), 0, -1):
        if n % c == 0:
            return c
    return 1


def _pick_tile(n, candidates):
    for c in candidates:
        if n % c == 0:
            return c
    return n  # fall back to the full (untiled) extent


# ---------------------------------------------------------------------------
# Kernel 1: sequential tanh-RNN recurrence, chunked along time, tiled along
# (padded) batch.
#   grid = (num_batch_tiles [parallel], num_time_chunks [arbitrary/sequential])
# ---------------------------------------------------------------------------
def _recurrence_kernel(t_chunk, x_ref, h0_ref, whh_ref, b_ref,
                       hall_ref, hfin_ref, h_sc):
    c = pl.program_id(1)

    # (Re)load the initial hidden state at the start of each batch tile's scan.
    @pl.when(c == 0)
    def _():
        h_sc[...] = h0_ref[...]

    def step(t, carry):
        x_t = x_ref[t].astype(jnp.float32)                       # (TB, H)
        h_new = jnp.tanh(
            x_t
            + jnp.dot(h_sc[...], whh_ref[...],
                      preferred_element_type=jnp.float32)
            + b_ref[...])
        h_sc[...] = h_new
        hall_ref[t] = h_new.astype(hall_ref.dtype)               # bf16 store
        return carry

    lax.fori_loop(0, t_chunk, step, None, unroll=True)

    # Keep the resident final-state output block up to date; Pallas writes it
    # back when the batch-tile index changes / at the end of the grid.
    hfin_ref[...] = h_sc[...]


# ---------------------------------------------------------------------------
# Kernel 2: dense head  logits = H_all @ W_dense^T + b_dense  (tiled matmul)
# ---------------------------------------------------------------------------
def _head_kernel(h_ref, wd_ref, bd_ref, out_ref):
    out_ref[...] = (jnp.dot(h_ref[...], wd_ref[...],
                            preferred_element_type=jnp.float32)
                    + bd_ref[...]).astype(out_ref.dtype)


def rnn_model_forward(tokens, state, params):
    """tokens: (batch, seq) int32; state: (1, batch, hidden) f32.

    Returns (output, new_state) with output: (seq*batch, vocab) f32 and
    new_state: (1, batch, hidden) f32 — exactly like RNNModel.forward.
    """
    w_ih, w_hh, b_ih, b_hh, w_dense, b_dense = (
        params["w_ih"], params["w_hh"], params["b_ih"], params["b_hh"],
        params["w_dense"], params["b_dense"])

    batch, seq = tokens.shape
    hidden = w_hh.shape[0]
    vocab = w_ih.shape[1]

    # Padded / tiled sizes (keep all blocks (8,128)-aligned).
    bp = _round_up(batch, 8)
    hp = _round_up(hidden, 128)
    vp = _round_up(vocab, 128)
    t_chunk = _largest_divisor_leq(seq, 32)
    n_chunks = seq // t_chunk
    tb = _pick_tile(bp, (128, 64, 32, 16, 8))
    nb = bp // tb

    f32, bf16 = jnp.float32, jnp.bfloat16

    # --- wrapper-side layout / parameter prep (plain JAX) -------------------
    # Embedding gather replaces the one-hot matmul: x_emb[t, b] = W_ih.T[tok].
    emb = jnp.zeros((vocab, hp), f32).at[:, :hidden].set(w_ih.T.astype(f32))
    x_emb = jnp.take(emb, tokens.T.astype(jnp.int32), axis=0)  # (seq, batch, hp)
    x_emb = jnp.pad(x_emb, ((0, 0), (0, bp - batch), (0, 0))).astype(bf16)

    h0 = jnp.zeros((bp, hp), f32).at[:batch, :hidden].set(state[0].astype(f32))
    whh = jnp.zeros((hp, hp), f32).at[:hidden, :hidden].set(w_hh.T.astype(f32))
    b_comb = jnp.zeros((1, hp), f32).at[0, :hidden].set((b_ih + b_hh).astype(f32))
    wd = (jnp.zeros((hp, vp), f32)
          .at[:hidden, :vocab].set(w_dense.T.astype(f32))).astype(bf16)
    bd = jnp.zeros((1, vp), f32).at[0, :vocab].set(b_dense.astype(f32))

    vmem_limit = 32 * 1024 * 1024  # > v5e's 16MiB default, fits v7x's 64MiB

    # --- pass 1: sequential recurrence ---------------------------------------
    h_all, h_fin = pl.pallas_call(
        functools.partial(_recurrence_kernel, t_chunk),
        out_shape=(
            jax.ShapeDtypeStruct((seq, bp, hp), bf16),   # all hidden states
            jax.ShapeDtypeStruct((bp, hp), f32),         # final hidden state
        ),
        grid_spec=pltpu.PrefetchScalarGridSpec(
            num_scalar_prefetch=0,
            grid=(nb, n_chunks),
            in_specs=[
                pl.BlockSpec((t_chunk, tb, hp), lambda b, c: (c, b, 0)),  # x_emb
                pl.BlockSpec((tb, hp), lambda b, c: (b, 0)),              # h0
                pl.BlockSpec((hp, hp), lambda b, c: (0, 0)),              # W_hh^T
                pl.BlockSpec((1, hp), lambda b, c: (0, 0)),               # bias
            ],
            out_specs=[
                pl.BlockSpec((t_chunk, tb, hp), lambda b, c: (c, b, 0)),  # h_all
                pl.BlockSpec((tb, hp), lambda b, c: (b, 0)),              # h_fin
            ],
            scratch_shapes=[pltpu.VMEM((tb, hp), f32)],                   # carry
        ),
        compiler_params=pltpu.CompilerParams(
            dimension_semantics=("parallel", "arbitrary"),
            vmem_limit_bytes=vmem_limit),
    )(x_emb, h0, whh, b_comb)

    # --- pass 2: dense head as one parallel tiled MXU matmul -----------------
    m = seq * bp
    h2d = h_all.reshape(m, hp)
    tm = _pick_tile(m, (512, 256, 128, 64, 32, 16))
    tn = _pick_tile(vp, (512, 256, 128))

    logits = pl.pallas_call(
        _head_kernel,
        out_shape=jax.ShapeDtypeStruct((m, vp), f32),
        grid_spec=pltpu.PrefetchScalarGridSpec(
            num_scalar_prefetch=0,
            grid=(m // tm, vp // tn),
            in_specs=[
                pl.BlockSpec((tm, hp), lambda i, j: (i, 0)),   # hidden states
                pl.BlockSpec((hp, tn), lambda i, j: (0, j)),   # W_dense^T tile
                pl.BlockSpec((1, tn), lambda i, j: (0, j)),    # b_dense tile
            ],
            out_specs=pl.BlockSpec((tm, tn), lambda i, j: (i, j)),
        ),
        compiler_params=pltpu.CompilerParams(
            dimension_semantics=("parallel", "parallel"),
            vmem_limit_bytes=vmem_limit),
    )(h2d, wd, bd)

    # --- strip padding back to the module's exact output layout --------------
    output = logits.reshape(seq, bp, vp)[:, :batch, :vocab].reshape(
        seq * batch, vocab)                                  # == Y.view(-1,H) order
    new_state = h_fin[:batch, :hidden][None]                 # (1, batch, hidden)
    return output, new_state


def rnn_model_reference(tokens, state, params):
    """Pure-JAX f32 reference (time-major scan), for correctness check."""
    w_ih, w_hh, b_ih, b_hh, w_dense, b_dense = (
        params["w_ih"], params["w_hh"], params["b_ih"], params["b_hh"],
        params["w_dense"], params["b_dense"])
    vocab = w_ih.shape[1]
    x = jax.nn.one_hot(tokens.T, vocab, dtype=jnp.float32)   # (seq, batch, vocab)

    def step(h, x_t):
        h_new = jnp.tanh(x_t @ w_ih.T + b_ih + h @ w_hh.T + b_hh)
        return h_new, h_new

    h_last, ys = lax.scan(step, state[0], x)
    out = ys.reshape(-1, ys.shape[-1]) @ w_dense.T + b_dense
    return out, h_last[None]


if __name__ == "__main__":
    BATCH, SEQ, VOCAB, HIDDEN = 4, 8, 32, 32

    key = jax.random.PRNGKey(0)
    k_tok, k_h0, k1, k2, k3, k4, k5, k6 = jax.random.split(key, 8)

    # Deterministic parameter init (PyTorch-style uniform(-1/sqrt(H), 1/sqrt(H)))
    bound = 1.0 / (HIDDEN ** 0.5)
    params = {
        "w_ih": jax.random.uniform(k1, (HIDDEN, VOCAB), jnp.float32, -bound, bound),
        "w_hh": jax.random.uniform(k2, (HIDDEN, HIDDEN), jnp.float32, -bound, bound),
        "b_ih": jax.random.uniform(k3, (HIDDEN,), jnp.float32, -bound, bound),
        "b_hh": jax.random.uniform(k4, (HIDDEN,), jnp.float32, -bound, bound),
        "w_dense": jax.random.uniform(k5, (VOCAB, HIDDEN), jnp.float32, -bound, bound),
        "b_dense": jax.random.uniform(k6, (VOCAB,), jnp.float32, -bound, bound),
    }

    tokens = jax.random.randint(k_tok, (BATCH, SEQ), 0, VOCAB, dtype=jnp.int32)
    state0 = jax.random.normal(k_h0, (1, BATCH, HIDDEN), jnp.float32)

    out, new_state = jax.jit(functools.partial(rnn_model_forward, params=params))(
        tokens, state0)
    out = jax.block_until_ready(out)
    new_state = jax.block_until_ready(new_state)

    assert out.shape == (SEQ * BATCH, VOCAB), out.shape
    assert new_state.shape == (1, BATCH, HIDDEN), new_state.shape

    ref_out, ref_state = rnn_model_reference(tokens, state0, params)
    # bf16 streamed activations / W_dense -> relaxed tolerance vs f32 reference.
    assert jnp.allclose(out, ref_out, rtol=2e-2, atol=2e-2)
    assert jnp.allclose(new_state, ref_state, rtol=2e-2, atol=2e-2)

    print("KERNEL_OK")
</pallas_src>

<mosaic_0001>
module attributes {stable_mosaic.version = 11 : i64} {
  func.func @_head_kernel(%arg0: i32, %arg1: i32, %arg2: memref<64x128xbf16, #tpu.memory_space<vmem>>, %arg3: memref<128x128xbf16, #tpu.memory_space<vmem>>, %arg4: memref<1x128xf32, #tpu.memory_space<vmem>>, %arg5: memref<64x128xf32, #tpu.memory_space<vmem>>) attributes {dimension_semantics = [#tpu.dimension_semantics<parallel>, #tpu.dimension_semantics<parallel>], iteration_bounds = array<i64: 1, 1>, scalar_prefetch = 0 : i64, scratch_operands = 0 : i64, tpu.core_type = #tpu.core_type<tc>, window_params = [{transform_indices = @transform_0, window_bounds = array<i64: 64, 128>}, {transform_indices = @transform_1, window_bounds = array<i64: 128, 128>}, {transform_indices = @transform_2, window_bounds = array<i64: 1, 128>}, {transform_indices = @transform_3, window_bounds = array<i64: 64, 128>}]} {
    %c0 = arith.constant 0 : index
    %c0_0 = arith.constant 0 : index
    %0 = vector.load %arg2[%c0, %c0_0] : memref<64x128xbf16, #tpu.memory_space<vmem>>, vector<64x128xbf16>
    %c0_1 = arith.constant 0 : index
    %c0_2 = arith.constant 0 : index
    %1 = vector.load %arg3[%c0_1, %c0_2] : memref<128x128xbf16, #tpu.memory_space<vmem>>, vector<128x128xbf16>
    %cst = arith.constant dense<0.000000e+00> : vector<64x128xf32>
    %2 = tpu.matmul %0, %1, %cst {dimension_numbers = #tpu.dot_dimension_numbers<[1], [0], [0], [1], [0, 0, 1, 1], [], []>} : vector<64x128xbf16>, vector<128x128xbf16>, vector<64x128xf32> -> vector<64x128xf32>
    %c0_3 = arith.constant 0 : index
    %c0_4 = arith.constant 0 : index
    %3 = vector.load %arg4[%c0_3, %c0_4] : memref<1x128xf32, #tpu.memory_space<vmem>>, vector<1x128xf32>
    %4 = vector.broadcast %3 : vector<1x128xf32> to vector<64x128xf32>
    %5 = arith.addf %2, %4 : vector<64x128xf32>
    %c0_5 = arith.constant 0 : index
    %c0_6 = arith.constant 0 : index
    %6 = vector.load %arg5[%c0_5, %c0_6] : memref<64x128xf32, #tpu.memory_space<vmem>>, vector<64x128xf32>
    tpu.vector_store %arg5[%c0_5, %c0_6], %5 {strides = array<i32>} : memref<64x128xf32, #tpu.memory_space<vmem>>, vector<64x128xf32>,
    return
  }
  func.func @transform_0(%arg0: i32, %arg1: i32) -> (i32, i32) {
    %c0_i32 = arith.constant 0 : i32
    %c0_i32_0 = arith.constant 0 : i32
    return %arg0, %c0_i32 : i32, i32
  }
  func.func @transform_1(%arg0: i32, %arg1: i32) -> (i32, i32) {
    %c0_i32 = arith.constant 0 : i32
    %c0_i32_0 = arith.constant 0 : i32
    return %c0_i32, %arg1 : i32, i32
  }
  func.func @transform_2(%arg0: i32, %arg1: i32) -> (i32, i32) {
    %c0_i32 = arith.constant 0 : i32
    %c0_i32_0 = arith.constant 0 : i32
    return %c0_i32, %arg1 : i32, i32
  }
  func.func @transform_3(%arg0: i32, %arg1: i32) -> (i32, i32) {
    %c0_i32 = arith.constant 0 : i32
    return %arg0, %arg1 : i32, i32
  }
}

module attributes {stable_mosaic.version = 11 : i64} {
  func.func @_recurrence_kernel(%arg0: i32, %arg1: i32, %arg2: memref<8x8x128xbf16, #tpu.memory_space<vmem>>, %arg3: memref<8x128xf32, #tpu.memory_space<vmem>>, %arg4: memref<128x128xf32, #tpu.memory_space<vmem>>, %arg5: memref<1x128xf32, #tpu.memory_space<vmem>>, %arg6: memref<8x8x128xbf16, #tpu.memory_space<vmem>>, %arg7: memref<8x128xf32, #tpu.memory_space<vmem>>, %arg8: memref<8x128xf32, #tpu.memory_space<vmem>>) attributes {dimension_semantics = [#tpu.dimension_semantics<parallel>, #tpu.dimension_semantics<arbitrary>], iteration_bounds = array<i64: 1, 1>, scalar_prefetch = 0 : i64, scratch_operands = 1 : i64, tpu.core_type = #tpu.core_type<tc>, window_params = [{transform_indices = @transform_0, window_bounds = array<i64: 8, 8, 128>}, {transform_indices = @transform_1, window_bounds = array<i64: 8, 128>}, {pipeline_mode = #tpu.pipeline_mode<synchronous>, transform_indices = @transform_2, window_bounds = array<i64: 128, 128>}, {pipeline_mode = #tpu.pipeline_mode<synchronous>, transform_indices = @transform_3, window_bounds = array<i64: 1, 128>}, {transform_indices = @transform_4, window_bounds = array<i64: 8, 8, 128>}, {transform_indices = @transform_5, window_bounds = array<i64: 8, 128>}]} {
    %c0_i32 = arith.constant 0 : i32
    %0 = arith.cmpi eq, %arg1, %c0_i32 : i32
    %1 = arith.extui %0 : i1 to i32
    %c0_i32_0 = arith.constant 0 : i32
    %2 = arith.cmpi ne, %1, %c0_i32_0 : i32
    scf.if %2 {
      %c0_108 = arith.constant 0 : index
      %c0_109 = arith.constant 0 : index
      %149 = vector.load %arg3[%c0_108, %c0_109] : memref<8x128xf32, #tpu.memory_space<vmem>>, vector<8x128xf32>
      %c0_110 = arith.constant 0 : index
      %c0_111 = arith.constant 0 : index
      %150 = vector.load %arg8[%c0_110, %c0_111] : memref<8x128xf32, #tpu.memory_space<vmem>>, vector<8x128xf32>
      tpu.vector_store %arg8[%c0_110, %c0_111], %149 {strides = array<i32>} : memref<8x128xf32, #tpu.memory_space<vmem>>, vector<8x128xf32>,
    } else {
    }
    %c0_i32_1 = arith.constant 0 : i32
    %3 = arith.index_cast %c0_i32_1 : i32 to index
    %c0 = arith.constant 0 : index
    %c0_2 = arith.constant 0 : index
    %4 = vector.load %arg2[%3, %c0, %c0_2] : memref<8x8x128xbf16, #tpu.memory_space<vmem>>, vector<1x8x128xbf16>
    %5 = vector.shape_cast %4 : vector<1x8x128xbf16> to vector<8x128xbf16>
    %6 = arith.extf %5 : vector<8x128xbf16> to vector<8x128xf32>
    %c0_3 = arith.constant 0 : index
    %c0_4 = arith.constant 0 : index
    %7 = vector.load %arg8[%c0_3, %c0_4] : memref<8x128xf32, #tpu.memory_space<vmem>>, vector<8x128xf32>
    %c0_5 = arith.constant 0 : index
    %c0_6 = arith.constant 0 : index
    %8 = vector.load %arg4[%c0_5, %c0_6] : memref<128x128xf32, #tpu.memory_space<vmem>>, vector<128x128xf32>
    %cst = arith.constant dense<0.000000e+00> : vector<8x128xf32>
    %9 = tpu.matmul %7, %8, %cst {dimension_numbers = #tpu.dot_dimension_numbers<[1], [0], [0], [1], [0, 0, 1, 1], [], []>} : vector<8x128xf32>, vector<128x128xf32>, vector<8x128xf32> -> vector<8x128xf32>
    %10 = arith.addf %6, %9 : vector<8x128xf32>
    %c0_7 = arith.constant 0 : index
    %c0_8 = arith.constant 0 : index
    %11 = vector.load %arg5[%c0_7, %c0_8] : memref<1x128xf32, #tpu.memory_space<vmem>>, vector<1x128xf32>
    %12 = vector.broadcast %11 : vector<1x128xf32> to vector<8x128xf32>
    %13 = arith.addf %10, %12 : vector<8x128xf32>
    %14 = math.tanh %13 : vector<8x128xf32>
    %c0_9 = arith.constant 0 : index
    %c0_10 = arith.constant 0 : index
    %15 = vector.load %arg8[%c0_9, %c0_10] : memref<8x128xf32, #tpu.memory_space<vmem>>, vector<8x128xf32>
    tpu.vector_store %arg8[%c0_9, %c0_10], %14 {strides = array<i32>} : memref<8x128xf32, #tpu.memory_space<vmem>>, vector<8x128xf32>,
    %16 = arith.truncf %14 : vector<8x128xf32> to vector<8x128xbf16>
    %17 = arith.index_cast %c0_i32_1 : i32 to index
    %c0_11 = arith.constant 0 : index
    %c0_12 = arith.constant 0 : index
    %18 = vector.load %arg6[%17, %c0_11, %c0_12] : memref<8x8x128xbf16, #tpu.memory_space<vmem>>, vector<1x8x128xbf16>
    %19 = vector.shape_cast %18 : vector<1x8x128xbf16> to vector<8x128xbf16>
    %20 = vector.shape_cast %16 : vector<8x128xbf16> to vector<1x8x128xbf16>
    tpu.vector_store %arg6[%17, %c0_11, %c0_12], %20 {strides = array<i32>} : memref<8x8x128xbf16, #tpu.memory_space<vmem>>, vector<1x8x128xbf16>,
    %c1_i32 = arith.constant 1 : i32
    %21 = arith.index_cast %c1_i32 : i32 to index
    %c0_13 = arith.constant 0 : index
    %c0_14 = arith.constant 0 : index
    %22 = vector.load %arg2[%21, %c0_13, %c0_14] : memref<8x8x128xbf16, #tpu.memory_space<vmem>>, vector<1x8x128xbf16>
    %23 = vector.shape_cast %22 : vector<1x8x128xbf16> to vector<8x128xbf16>
    %24 = arith.extf %23 : vector<8x128xbf16> to vector<8x128xf32>
    %c0_15 = arith.constant 0 : index
    %c0_16 = arith.constant 0 : index
    %25 = vector.load %arg8[%c0_15, %c0_16] : memref<8x128xf32, #tpu.memory_space<vmem>>, vector<8x128xf32>
    %c0_17 = arith.constant 0 : index
    %c0_18 = arith.constant 0 : index
    %26 = vector.load %arg4[%c0_17, %c0_18] : memref<128x128xf32, #tpu.memory_space<vmem>>, vector<128x128xf32>
    %cst_19 = arith.constant dense<0.000000e+00> : vector<8x128xf32>
    %27 = tpu.matmul %25, %26, %cst_19 {dimension_numbers = #tpu.dot_dimension_numbers<[1], [0], [0], [1], [0, 0, 1, 1], [], []>} : vector<8x128xf32>, vector<128x128xf32>, vector<8x128xf32> -> vector<8x128xf32>
    %28 = arith.addf %24, %27 : vector<8x128xf32>
    %c0_20 = arith.constant 0 : index
    %c0_21 = arith.constant 0 : index
    %29 = vector.load %arg5[%c0_20, %c0_21] : memref<1x128xf32, #tpu.memory_space<vmem>>, vector<1x128xf32>
    %30 = vector.broadcast %29 : vector<1x128xf32> to vector<8x128xf32>
    %31 = arith.addf %28, %30 : vector<8x128xf32>
    %32 = math.tanh %31 : vector<8x128xf32>
    %c0_22 = arith.constant 0 : index
    %c0_23 = arith.constant 0 : index
    %33 = vector.load %arg8[%c0_22, %c0_23] : memref<8x128xf32, #tpu.memory_space<vmem>>, vector<8x128xf32>
    tpu.vector_store %arg8[%c0_22, %c0_23], %32 {strides = array<i32>} : memref<8x128xf32, #tpu.memory_space<vmem>>, vector<8x128xf32>,
    %34 = arith.truncf %32 : vector<8x128xf32> to vector<8x128xbf16>
    %35 = arith.index_cast %c1_i32 : i32 to index
    %c0_24 = arith.constant 0 : index
    %c0_25 = arith.constant 0 : index
    %36 = vector.load %arg6[%35, %c0_24, %c0_25] : memref<8x8x128xbf16, #tpu.memory_space<vmem>>, vector<1x8x128xbf16>
    %37 = vector.shape_cast %36 : vector<1x8x128xbf16> to vector<8x128xbf16>
    %38 = vector.shape_cast %34 : vector<8x128xbf16> to vector<1x8x128xbf16>
    tpu.vector_store %arg6[%35, %c0_24, %c0_25], %38 {strides = array<i32>} : memref<8x8x128xbf16, #tpu.memory_space<vmem>>, vector<1x8x128xbf16>,
    %c2_i32 = arith.constant 2 : i32
    %39 = arith.index_cast %c2_i32 : i32 to index
    %c0_26 = arith.constant 0 : index
    %c0_27 = arith.constant 0 : index
    %40 = vector.load %arg2[%39, %c0_26, %c0_27] : memref<8x8x128xbf16, #tpu.memory_space<vmem>>, vector<1x8x128xbf16>
    %41 = vector.shape_cast %40 : vector<1x8x128xbf16> to vector<8x128xbf16>
    %42 = arith.extf %41 : vector<8x128xbf16> to vector<8x128xf32>
    %c0_28 = arith.constant 0 : index
    %c0_29 = arith.constant 0 : index
    %43 = vector.load %arg8[%c0_28, %c0_29] : memref<8x128xf32, #tpu.memory_space<vmem>>, vector<8x128xf32>
    %c0_30 = arith.constant 0 : index
    %c0_31 = arith.constant 0 : index
    %44 = vector.load %arg4[%c0_30, %c0_31] : memref<128x128xf32, #tpu.memory_space<vmem>>, vector<128x128xf32>
    %cst_32 = arith.constant dense<0.000000e+00> : vector<8x128xf32>
    %45 = tpu.matmul %43, %44, %cst_32 {dimension_numbers = #tpu.dot_dimension_numbers<[1], [0], [0], [1], [0, 0, 1, 1], [], []>} : vector<8x128xf32>, vector<128x128xf32>, vector<8x128xf32> -> vector<8x128xf32>
    %46 = arith.addf %42, %45 : vector<8x128xf32>
    %c0_33 = arith.constant 0 : index
    %c0_34 = arith.constant 0 : index
    %47 = vector.load %arg5[%c0_33, %c0_34] : memref<1x128xf32, #tpu.memory_space<vmem>>, vector<1x128xf32>
    %48 = vector.broadcast %47 : vector<1x128xf32> to vector<8x128xf32>
    %49 = arith.addf %46, %48 : vector<8x128xf32>
    %50 = math.tanh %49 : vector<8x128xf32>
    %c0_35 = arith.constant 0 : index
    %c0_36 = arith.constant 0 : index
    %51 = vector.load %arg8[%c0_35, %c0_36] : memref<8x128xf32, #tpu.memory_space<vmem>>, vector<8x128xf32>
    tpu.vector_store %arg8[%c0_35, %c0_36], %50 {strides = array<i32>} : memref<8x128xf32, #tpu.memory_space<vmem>>, vector<8x128xf32>,
    %52 = arith.truncf %50 : vector<8x128xf32> to vector<8x128xbf16>
    %53 = arith.index_cast %c2_i32 : i32 to index
    %c0_37 = arith.constant 0 : index
    %c0_38 = arith.constant 0 : index
    %54 = vector.load %arg6[%53, %c0_37, %c0_38] : memref<8x8x128xbf16, #tpu.memory_space<vmem>>, vector<1x8x128xbf16>
    %55 = vector.shape_cast %54 : vector<1x8x128xbf16> to vector<8x128xbf16>
    %56 = vector.shape_cast %52 : vector<8x128xbf16> to vector<1x8x128xbf16>
    tpu.vector_store %arg6[%53, %c0_37, %c0_38], %56 {strides = array<i32>} : memref<8x8x128xbf16, #tpu.memory_space<vmem>>, vector<1x8x128xbf16>,
    %c3_i32 = arith.constant 3 : i32
    %57 = arith.index_cast %c3_i32 : i32 to index
    %c0_39 = arith.constant 0 : index
    %c0_40 = arith.constant 0 : index
    %58 = vector.load %arg2[%57, %c0_39, %c0_40] : memref<8x8x128xbf16, #tpu.memory_space<vmem>>, vector<1x8x128xbf16>
    %59 = vector.shape_cast %58 : vector<1x8x128xbf16> to vector<8x128xbf16>
    %60 = arith.extf %59 : vector<8x128xbf16> to vector<8x128xf32>
    %c0_41 = arith.constant 0 : index
    %c0_42 = arith.constant 0 : index
    %61 = vector.load %arg8[%c0_41, %c0_42] : memref<8x128xf32, #tpu.memory_space<vmem>>, vector<8x128xf32>
    %c0_43 = arith.constant 0 : index
    %c0_44 = arith.constant 0 : index
    %62 = vector.load %arg4[%c0_43, %c0_44] : memref<128x128xf32, #tpu.memory_space<vmem>>, vector<128x128xf32>
    %cst_45 = arith.constant dense<0.000000e+00> : vector<8x128xf32>
    %63 = tpu.matmul %61, %62, %cst_45 {dimension_numbers = #tpu.dot_dimension_numbers<[1], [0], [0], [1], [0, 0, 1, 1], [], []>} : vector<8x128xf32>, vector<128x128xf32>, vector<8x128xf32> -> vector<8x128xf32>
    %64 = arith.addf %60, %63 : vector<8x128xf32>
    %c0_46 = arith.constant 0 : index
    %c0_47 = arith.constant 0 : index
    %65 = vector.load %arg5[%c0_46, %c0_47] : memref<1x128xf32, #tpu.memory_space<vmem>>, vector<1x128xf32>
    %66 = vector.broadcast %65 : vector<1x128xf32> to vector<8x128xf32>
    %67 = arith.addf %64, %66 : vector<8x128xf32>
    %68 = math.tanh %67 : vector<8x128xf32>
    %c0_48 = arith.constant 0 : index
    %c0_49 = arith.constant 0 : index
    %69 = vector.load %arg8[%c0_48, %c0_49] : memref<8x128xf32, #tpu.memory_space<vmem>>, vector<8x128xf32>
    tpu.vector_store %arg8[%c0_48, %c0_49], %68 {strides = array<i32>} : memref<8x128xf32, #tpu.memory_space<vmem>>, vector<8x128xf32>,
    %70 = arith.truncf %68 : vector<8x128xf32> to vector<8x128xbf16>
    %71 = arith.index_cast %c3_i32 : i32 to index
    %c0_50 = arith.constant 0 : index
    %c0_51 = arith.constant 0 : index
    %72 = vector.load %arg6[%71, %c0_50, %c0_51] : memref<8x8x128xbf16, #tpu.memory_space<vmem>>, vector<1x8x128xbf16>
    %73 = vector.shape_cast %72 : vector<1x8x128xbf16> to vector<8x128xbf16>
    %74 = vector.shape_cast %70 : vector<8x128xbf16> to vector<1x8x128xbf16>
    tpu.vector_store %arg6[%71, %c0_50, %c0_51], %74 {strides = array<i32>} : memref<8x8x128xbf16, #tpu.memory_space<vmem>>, vector<1x8x128xbf16>,
    %c4_i32 = arith.constant 4 : i32
    %75 = arith.index_cast %c4_i32 : i32 to index
    %c0_52 = arith.constant 0 : index
    %c0_53 = arith.constant 0 : index
    %76 = vector.load %arg2[%75, %c0_52, %c0_53] : memref<8x8x128xbf16, #tpu.memory_space<vmem>>, vector<1x8x128xbf16>
    %77 = vector.shape_cast %76 : vector<1x8x128xbf16> to vector<8x128xbf16>
    %78 = arith.extf %77 : vector<8x128xbf16> to vector<8x128xf32>
    %c0_54 = arith.constant 0 : index
    %c0_55 = arith.constant 0 : index
    %79 = vector.load %arg8[%c0_54, %c0_55] : memref<8x128xf32, #tpu.memory_space<vmem>>, vector<8x128xf32>
    %c0_56 = arith.constant 0 : index
    %c0_57 = arith.constant 0 : index
    %80 = vector.load %arg4[%c0_56, %c0_57] : memref<128x128xf32, #tpu.memory_space<vmem>>, vector<128x128xf32>
    %cst_58 = arith.constant dense<0.000000e+00> : vector<8x128xf32>
    %81 = tpu.matmul %79, %80, %cst_58 {dimension_numbers = #tpu.dot_dimension_numbers<[1], [0], [0], [1], [0, 0, 1, 1], [], []>} : vector<8x128xf32>, vector<128x128xf32>, vector<8x128xf32> -> vector<8x128xf32>
    %82 = arith.addf %78, %81 : vector<8x128xf32>
    %c0_59 = arith.constant 0 : index
    %c0_60 = arith.constant 0 : index
    %83 = vector.load %arg5[%c0_59, %c0_60] : memref<1x128xf32, #tpu.memory_space<vmem>>, vector<1x128xf32>
    %84 = vector.broadcast %83 : vector<1x128xf32> to vector<8x128xf32>
    %85 = arith.addf %82, %84 : vector<8x128xf32>
    %86 = math.tanh %85 : vector<8x128xf32>
    %c0_61 = arith.constant 0 : index
    %c0_62 = arith.constant 0 : index
    %87 = vector.load %arg8[%c0_61, %c0_62] : memref<8x128xf32, #tpu.memory_space<vmem>>, vector<8x128xf32>
    tpu.vector_store %arg8[%c0_61, %c0_62], %86 {strides = array<i32>} : memref<8x128xf32, #tpu.memory_space<vmem>>, vector<8x128xf32>,
    %88 = arith.truncf %86 : vector<8x128xf32> to vector<8x128xbf16>
    %89 = arith.index_cast %c4_i32 : i32 to index
    %c0_63 = arith.constant 0 : index
    %c0_64 = arith.constant 0 : index
    %90 = vector.load %arg6[%89, %c0_63, %c0_64] : memref<8x8x128xbf16, #tpu.memory_space<vmem>>, vector<1x8x128xbf16>
    %91 = vector.shape_cast %90 : vector<1x8x128xbf16> to vector<8x128xbf16>
    %92 = vector.shape_cast %88 : vector<8x128xbf16> to vector<1x8x128xbf16>
    tpu.vector_store %arg6[%89, %c0_63, %c0_64], %92 {strides = array<i32>} : memref<8x8x128xbf16, #tpu.memory_space<vmem>>, vector<1x8x128xbf16>,
    %c5_i32 = arith.constant 5 : i32
    %93 = arith.index_cast %c5_i32 : i32 to index
    %c0_65 = arith.constant 0 : index
    %c0_66 = arith.constant 0 : index
    %94 = vector.load %arg2[%93, %c0_65, %c0_66] : memref<8x8x128xbf16, #tpu.memory_space<vmem>>, vector<1x8x128xbf16>
    %95 = vector.shape_cast %94 : vector<1x8x128xbf16> to vector<8x128xbf16>
    %96 = arith.extf %95 : vector<8x128xbf16> to vector<8x128xf32>
    %c0_67 = arith.constant 0 : index
    %c0_68 = arith.constant 0 : index
    %97 = vector.load %arg8[%c0_67, %c0_68] : memref<8x128xf32, #tpu.memory_space<vmem>>, vector<8x128xf32>
    %c0_69 = arith.constant 0 : index
    %c0_70 = arith.constant 0 : index
    %98 = vector.load %arg4[%c0_69, %c0_70] : memref<128x128xf32, #tpu.memory_space<vmem>>, vector<128x128xf32>
    %cst_71 = arith.constant dense<0.000000e+00> : vector<8x128xf32>
    %99 = tpu.matmul %97, %98, %cst_71 {dimension_numbers = #tpu.dot_dimension_numbers<[1], [0], [0], [1], [0, 0, 1, 1], [], []>} : vector<8x128xf32>, vector<128x128xf32>, vector<8x128xf32> -> vector<8x128xf32>
    %100 = arith.addf %96, %99 : vector<8x128xf32>
    %c0_72 = arith.constant 0 : index
    %c0_73 = arith.constant 0 : index
    %101 = vector.load %arg5[%c0_72, %c0_73] : memref<1x128xf32, #tpu.memory_space<vmem>>, vector<1x128xf32>
    %102 = vector.broadcast %101 : vector<1x128xf32> to vector<8x128xf32>
    %103 = arith.addf %100, %102 : vector<8x128xf32>
    %104 = math.tanh %103 : vector<8x128xf32>
    %c0_74 = arith.constant 0 : index
    %c0_75 = arith.constant 0 : index
    %105 = vector.load %arg8[%c0_74, %c0_75] : memref<8x128xf32, #tpu.memory_space<vmem>>, vector<8x128xf32>
    tpu.vector_store %arg8[%c0_74, %c0_75], %104 {strides = array<i32>} : memref<8x128xf32, #tpu.memory_space<vmem>>, vector<8x128xf32>,
    %106 = arith.truncf %104 : vector<8x128xf32> to vector<8x128xbf16>
    %107 = arith.index_cast %c5_i32 : i32 to index
    %c0_76 = arith.constant 0 : index
    %c0_77 = arith.constant 0 : index
    %108 = vector.load %arg6[%107, %c0_76, %c0_77] : memref<8x8x128xbf16, #tpu.memory_space<vmem>>, vector<1x8x128xbf16>
    %109 = vector.shape_cast %108 : vector<1x8x128xbf16> to vector<8x128xbf16>
    %110 = vector.shape_cast %106 : vector<8x128xbf16> to vector<1x8x128xbf16>
    tpu.vector_store %arg6[%107, %c0_76, %c0_77], %110 {strides = array<i32>} : memref<8x8x128xbf16, #tpu.memory_space<vmem>>, vector<1x8x128xbf16>,
    %c6_i32 = arith.constant 6 : i32
    %111 = arith.index_cast %c6_i32 : i32 to index
    %c0_78 = arith.constant 0 : index
    %c0_79 = arith.constant 0 : index
    %112 = vector.load %arg2[%111, %c0_78, %c0_79] : memref<8x8x128xbf16, #tpu.memory_space<vmem>>, vector<1x8x128xbf16>
    %113 = vector.shape_cast %112 : vector<1x8x128xbf16> to vector<8x128xbf16>
    %114 = arith.extf %113 : vector<8x128xbf16> to vector<8x128xf32>
    %c0_80 = arith.constant 0 : index
    %c0_81 = arith.constant 0 : index
    %115 = vector.load %arg8[%c0_80, %c0_81] : memref<8x128xf32, #tpu.memory_space<vmem>>, vector<8x128xf32>
    %c0_82 = arith.constant 0 : index
    %c0_83 = arith.constant 0 : index
    %116 = vector.load %arg4[%c0_82, %c0_83] : memref<128x128xf32, #tpu.memory_space<vmem>>, vector<128x128xf32>
    %cst_84 = arith.constant dense<0.000000e+00> : vector<8x128xf32>
    %117 = tpu.matmul %115, %116, %cst_84 {dimension_numbers = #tpu.dot_dimension_numbers<[1], [0], [0], [1], [0, 0, 1, 1], [], []>} : vector<8x128xf32>, vector<128x128xf32>, vector<8x128xf32> -> vector<8x128xf32>
    %118 = arith.addf %114, %117 : vector<8x128xf32>
    %c0_85 = arith.constant 0 : index
    %c0_86 = arith.constant 0 : index
    %119 = vector.load %arg5[%c0_85, %c0_86] : memref<1x128xf32, #tpu.memory_space<vmem>>, vector<1x128xf32>
    %120 = vector.broadcast %119 : vector<1x128xf32> to vector<8x128xf32>
    %121 = arith.addf %118, %120 : vector<8x128xf32>
    %122 = math.tanh %121 : vector<8x128xf32>
    %c0_87 = arith.constant 0 : index
    %c0_88 = arith.constant 0 : index
    %123 = vector.load %arg8[%c0_87, %c0_88] : memref<8x128xf32, #tpu.memory_space<vmem>>, vector<8x128xf32>
    tpu.vector_store %arg8[%c0_87, %c0_88], %122 {strides = array<i32>} : memref<8x128xf32, #tpu.memory_space<vmem>>, vector<8x128xf32>,
    %124 = arith.truncf %122 : vector<8x128xf32> to vector<8x128xbf16>
    %125 = arith.index_cast %c6_i32 : i32 to index
    %c0_89 = arith.constant 0 : index
    %c0_90 = arith.constant 0 : index
    %126 = vector.load %arg6[%125, %c0_89, %c0_90] : memref<8x8x128xbf16, #tpu.memory_space<vmem>>, vector<1x8x128xbf16>
    %127 = vector.shape_cast %126 : vector<1x8x128xbf16> to vector<8x128xbf16>
    %128 = vector.shape_cast %124 : vector<8x128xbf16> to vector<1x8x128xbf16>
    tpu.vector_store %arg6[%125, %c0_89, %c0_90], %128 {strides = array<i32>} : memref<8x8x128xbf16, #tpu.memory_space<vmem>>, vector<1x8x128xbf16>,
    %c7_i32 = arith.constant 7 : i32
    %129 = arith.index_cast %c7_i32 : i32 to index
    %c0_91 = arith.constant 0 : index
    %c0_92 = arith.constant 0 : index
    %130 = vector.load %arg2[%129, %c0_91, %c0_92] : memref<8x8x128xbf16, #tpu.memory_space<vmem>>, vector<1x8x128xbf16>
    %131 = vector.shape_cast %130 : vector<1x8x128xbf16> to vector<8x128xbf16>
    %132 = arith.extf %131 : vector<8x128xbf16> to vector<8x128xf32>
    %c0_93 = arith.constant 0 : index
    %c0_94 = arith.constant 0 : index
    %133 = vector.load %arg8[%c0_93, %c0_94] : memref<8x128xf32, #tpu.memory_space<vmem>>, vector<8x128xf32>
    %c0_95 = arith.constant 0 : index
    %c0_96 = arith.constant 0 : index
    %134 = vector.load %arg4[%c0_95, %c0_96] : memref<128x128xf32, #tpu.memory_space<vmem>>, vector<128x128xf32>
    %cst_97 = arith.constant dense<0.000000e+00> : vector<8x128xf32>
    %135 = tpu.matmul %133, %134, %cst_97 {dimension_numbers = #tpu.dot_dimension_numbers<[1], [0], [0], [1], [0, 0, 1, 1], [], []>} : vector<8x128xf32>, vector<128x128xf32>, vector<8x128xf32> -> vector<8x128xf32>
    %136 = arith.addf %132, %135 : vector<8x128xf32>
    %c0_98 = arith.constant 0 : index
    %c0_99 = arith.constant 0 : index
    %137 = vector.load %arg5[%c0_98, %c0_99] : memref<1x128xf32, #tpu.memory_space<vmem>>, vector<1x128xf32>
    %138 = vector.broadcast %137 : vector<1x128xf32> to vector<8x128xf32>
    %139 = arith.addf %136, %138 : vector<8x128xf32>
    %140 = math.tanh %139 : vector<8x128xf32>
    %c0_100 = arith.constant 0 : index
    %c0_101 = arith.constant 0 : index
    %141 = vector.load %arg8[%c0_100, %c0_101] : memref<8x128xf32, #tpu.memory_space<vmem>>, vector<8x128xf32>
    tpu.vector_store %arg8[%c0_100, %c0_101], %140 {strides = array<i32>} : memref<8x128xf32, #tpu.memory_space<vmem>>, vector<8x128xf32>,
    %142 = arith.truncf %140 : vector<8x128xf32> to vector<8x128xbf16>
    %143 = arith.index_cast %c7_i32 : i32 to index
    %c0_102 = arith.constant 0 : index
    %c0_103 = arith.constant 0 : index
    %144 = vector.load %arg6[%143, %c0_102, %c0_103] : memref<8x8x128xbf16, #tpu.memory_space<vmem>>, vector<1x8x128xbf16>
    %145 = vector.shape_cast %144 : vector<1x8x128xbf16> to vector<8x128xbf16>
    %146 = vector.shape_cast %142 : vector<8x128xbf16> to vector<1x8x128xbf16>
    tpu.vector_store %arg6[%143, %c0_102, %c0_103], %146 {strides = array<i32>} : memref<8x8x128xbf16, #tpu.memory_space<vmem>>, vector<1x8x128xbf16>,
    %c8_i32 = arith.constant 8 : i32
    %c0_104 = arith.constant 0 : index
    %c0_105 = arith.constant 0 : index
    %147 = vector.load %arg8[%c0_104, %c0_105] : memref<8x128xf32, #tpu.memory_space<vmem>>, vector<8x128xf32>
    %c0_106 = arith.constant 0 : index
    %c0_107 = arith.constant 0 : index
    %148 = vector.load %arg7[%c0_106, %c0_107] : memref<8x128xf32, #tpu.memory_space<vmem>>, vector<8x128xf32>
    tpu.vector_store %arg7[%c0_106, %c0_107], %147 {strides = array<i32>} : memref<8x128xf32, #tpu.memory_space<vmem>>, vector<8x128xf32>,
    return
  }
  func.func @transform_0(%arg0: i32, %arg1: i32) -> (i32, i32, i32) {
    %c0_i32 = arith.constant 0 : i32
    %c0_i32_0 = arith.constant 0 : i32
    return %arg1, %arg0, %c0_i32 : i32, i32, i32
  }
  func.func @transform_1(%arg0: i32, %arg1: i32) -> (i32, i32) {
    %c0_i32 = arith.constant 0 : i32
    %c0_i32_0 = arith.constant 0 : i32
    return %arg0, %c0_i32 : i32, i32
  }
  func.func @transform_2(%arg0: i32, %arg1: i32) -> (i32, i32) {
    %c0_i32 = arith.constant 0 : i32
    %c0_i32_0 = arith.constant 0 : i32
    %c0_i32_1 = arith.constant 0 : i32
    return %c0_i32, %c0_i32_0 : i32, i32
  }
  func.func @transform_3(%arg0: i32, %arg1: i32) -> (i32, i32) {
    %c0_i32 = arith.constant 0 : i32
    %c0_i32_0 = arith.constant 0 : i32
    %c0_i32_1 = arith.constant 0 : i32
    return %c0_i32, %c0_i32_0 : i32, i32
  }
  func.func @transform_4(%arg0: i32, %arg1: i32) -> (i32, i32, i32) {
    %c0_i32 = arith.constant 0 : i32
    %c0_i32_0 = arith.constant 0 : i32
    return %arg1, %arg0, %c0_i32 : i32, i32, i32
  }
  func.func @transform_5(%arg0: i32, %arg1: i32) -> (i32, i32) {
    %c0_i32 = arith.constant 0 : i32
    %c0_i32_0 = arith.constant 0 : i32
    return %arg0, %c0_i32 : i32, i32
  }
}

</mosaic_0001>

<llo_original>
// kernel: rnn_model_forward.3
$region0: #{rnn_model_forward.3}
  #allocation0 [shape = 'u32[]', space=smem, size = 0x4, offset = 0x4, fixed_abs, tag = 'smem constant byte address 0x4 - core index']
  #allocation1 [shape = 'u32[144,128]{1,0:T(1,128)}', space=vmem, size = 0x12000, scoped, tag = 'internal scratch']
  %s0 = inlined_call_operand.vmem [shape: bf16[64,128], index: 0, kind: input, shape index: {}]
  %s1 = inlined_call_operand.vmem [shape: bf16[128,128], index: 1, kind: input, shape index: {}]
  %s2 = inlined_call_operand.vmem [shape: f32[1,128], index: 2, kind: input, shape index: {}]
  %s3 = inlined_call_operand.vmem [shape: f32[64,128], index: 3, kind: output, shape index: {}]
  %s4 = sld [smem:[#allocation0]]
  $region22: #{rnn_model_forward.3} parent=0
    _
  %s6 = ssub.s32 1, %s4
  %s7 = scalar_select 0, %s6, %s4
  // Predicated region
  $region2: #{rnn_model_forward.3} parent=0 // pred_check
    _
  $region3: #{rnn_model_forward.3} parent=0 // pred_check_branch
    %9 = sbr.rel (0) target = $region5
  $region4: #{rnn_model_forward.3} parent=0 // pred_region
    _
  $region5: #{rnn_model_forward.3} parent=0 // pred_fallthru
    _
  // Predicated region
  $region6: #{rnn_model_forward.3} parent=0 // pred_check
    _
  $region7: #{rnn_model_forward.3} parent=0 // pred_check_branch
    %11 = sbr.rel (0) target = $region9
  $region8: #{rnn_model_forward.3} parent=0 // pred_region
    _
  $region9: #{rnn_model_forward.3} parent=0 // pred_fallthru
    _
  // Predicated region
  $region10: #{rnn_model_forward.3} parent=0 // pred_check
    _
  $region11: #{rnn_model_forward.3} parent=0 // pred_check_branch
    %13 = sbr.rel (0) target = $region13
  $region12: #{rnn_model_forward.3} parent=0 // pred_region
    _
  $region13: #{rnn_model_forward.3} parent=0 // pred_fallthru
    _
  %v15 = vld [vmem:[%s0] sm:$0xf]
  %v16 = vld [vmem:[%s0 + $0x4] sm:$0xf]
  %v17 = vld [vmem:[%s0 + $0x8] sm:$0xf]
  %v18 = vld [vmem:[%s0 + $0xc] sm:$0xf]
  %v19 = vld [vmem:[%s0 + $0x10] sm:$0xf]
  %v20 = vld [vmem:[%s0 + $0x14] sm:$0xf]
  %v21 = vld [vmem:[%s0 + $0x18] sm:$0xf]
  %v22 = vld [vmem:[%s0 + $0x1c] sm:$0xf]
  %v23 = vld [vmem:[%s1] sm:$0xf]
  %v24 = vld [vmem:[%s1 + $0x4] sm:$0xf]
  %v25 = vld [vmem:[%s1 + $0x8] sm:$0xf]
  %v26 = vld [vmem:[%s1 + $0xc] sm:$0xf]
  %v27 = vld [vmem:[%s1 + $0x10] sm:$0xf]
  %v28 = vld [vmem:[%s1 + $0x14] sm:$0xf]
  %v29 = vld [vmem:[%s1 + $0x18] sm:$0xf]
  %v30 = vld [vmem:[%s1 + $0x1c] sm:$0xf]
  %v31 = vld [vmem:[%s1 + $0x20] sm:$0xf]
  %v32 = vld [vmem:[%s1 + $0x24] sm:$0xf]
  %v33 = vld [vmem:[%s1 + $0x28] sm:$0xf]
  %v34 = vld [vmem:[%s1 + $0x2c] sm:$0xf]
  %v35 = vld [vmem:[%s1 + $0x30] sm:$0xf]
  %v36 = vld [vmem:[%s1 + $0x34] sm:$0xf]
  %v37 = vld [vmem:[%s1 + $0x38] sm:$0xf]
  %v38 = vld [vmem:[%s1 + $0x3c] sm:$0xf]
  %v39 = vld [vmem:[%s2] sm:$0x1]
  %v41 = vlaneseq
  %v42 = vshrl.u32 %v41, 7
  %v43 = vsub.s32 0, %v42
  %v44 = vrot.slane %v39, %v43
  %v54 = vunpack.c.l.b16 %v15
  %v55 = vunpack.c.l.b16 %v16
  %v56 = vunpack.c.l.b16 %v17
  %v57 = vunpack.c.l.b16 %v18
  %v58 = vunpack.c.l.b16 %v19
  %v59 = vunpack.c.l.b16 %v20
  %v60 = vunpack.c.l.b16 %v21
  %v61 = vunpack.c.l.b16 %v22
  %v62 = vpack.c.b16 %v55, %v54
  %v63 = vpack.c.b16 %v57, %v56
  %v64 = vpack.c.b16 %v59, %v58
  %v65 = vpack.c.b16 %v61, %v60
  %v86 = vunpack.c.l.b16 %v23
  %v87 = vunpack.c.l.b16 %v24
  %v88 = vunpack.c.l.b16 %v25
  %v89 = vunpack.c.l.b16 %v26
  %v90 = vunpack.c.l.b16 %v27
  %v91 = vunpack.c.l.b16 %v28
  %v92 = vunpack.c.l.b16 %v29
  %v93 = vunpack.c.l.b16 %v30
  %v94 = vunpack.c.l.b16 %v31
  %v95 = vunpack.c.l.b16 %v32
  %v96 = vunpack.c.l.b16 %v33
  %v97 = vunpack.c.l.b16 %v34
  %v98 = vunpack.c.l.b16 %v35
  %v99 = vunpack.c.l.b16 %v36
  %v100 = vunpack.c.l.b16 %v37
  %v101 = vunpack.c.l.b16 %v38
  %v102 = vpack.c.b16 %v87, %v86
  %v103 = vpack.c.b16 %v89, %v88
  %v104 = vpack.c.b16 %v91, %v90
  %v105 = vpack.c.b16 %v93, %v92
  %v106 = vpack.c.b16 %v95, %v94
  %v107 = vpack.c.b16 %v97, %v96
  %v108 = vpack.c.b16 %v99, %v98
  %v109 = vpack.c.b16 %v101, %v100
  %118 = vmatprep.subr.bf16.mxu0 0
  %119 = vmatpush1.bf16.msra.mxu0 %v109
  %120 = vmatprep.subr.bf16.mxu0 0
  %121 = vmatpush1.bf16.msra.mxu0 %v108
  %122 = vmatprep.subr.bf16.mxu0 0
  %123 = vmatpush1.bf16.msra.mxu0 %v107
  %124 = vmatprep.subr.bf16.mxu0 0
  %125 = vmatpush1.bf16.msra.mxu0 %v106
  %126 = vmatprep.subr.bf16.mxu0 0
  %127 = vmatpush1.bf16.msra.mxu0 %v105
  %128 = vmatprep.subr.bf16.mxu0 0
  %129 = vmatpush1.bf16.msra.mxu0 %v104
  %130 = vmatprep.subr.bf16.mxu0 0
  %131 = vmatpush1.bf16.msra.mxu0 %v103
  %132 = vmatprep.subr.bf16.mxu0 0
  %133 = vmatpush1.bf16.msra.mxu0 %v102
  %134 = vmatprep.subr.bf16.mxu0 0
  %135 = vmatpush2.bf16.msra.mxu0 0
  %136 = vmatprep.subr.bf16.mxu0 0
  %137 = vmatpush2.bf16.msra.mxu0 0
  %138 = vmatprep.subr.bf16.mxu0 0
  %139 = vmatpush2.bf16.msra.mxu0 0
  %140 = vmatprep.subr.bf16.mxu0 0
  %141 = vmatpush2.bf16.msra.mxu0 0
  %142 = vmatprep.subr.bf16.mxu0 0
  %143 = vmatpush2.bf16.msra.mxu0 0
  %144 = vmatprep.subr.bf16.mxu0 0
  %145 = vmatpush2.bf16.msra.mxu0 0
  %146 = vmatprep.subr.bf16.mxu0 0
  %147 = vmatpush2.bf16.msra.mxu0 0
  %148 = vmatprep.subr.bf16.mxu0 0
  %149 = vmatpush2.bf16.msra.mxu0 0
  %150 = vmatprep.mubr.bf16.mxu0 0
  %151 = vmatmul.mubr.bf16.gmra.mxu0 %v62
  %v152 = vpop.f32.mrf.mxu0
  %v153 = vadd.f32 %v44, %v152
  %v154 = vpop.f32.mrf.mxu0
  %v155 = vpop.f32.mrf.mxu0
  %v156 = vadd.f32 %v44, %v155
  %v157 = vpop.f32.mrf.mxu0
  %158 = vmatprep.mubr.bf16.mxu0 0
  %159 = vmatmul.mubr.bf16.gmra.mxu0 %v63
  %v160 = vpop.f32.mrf.mxu0
  %v161 = vadd.f32 %v44, %v160
  %v162 = vpop.f32.mrf.mxu0
  %v163 = vpop.f32.mrf.mxu0
  %v164 = vadd.f32 %v44, %v163
  %v165 = vpop.f32.mrf.mxu0
  %166 = vmatprep.mubr.bf16.mxu0 0
  %167 = vmatmul.mubr.bf16.gmra.mxu0 %v64
  %v168 = vpop.f32.mrf.mxu0
  %v169 = vadd.f32 %v44, %v168
  %v170 = vpop.f32.mrf.mxu0
  %v171 = vpop.f32.mrf.mxu0
  %v172 = vadd.f32 %v44, %v171
  %v173 = vpop.f32.mrf.mxu0
  %174 = vmatprep.mubr.bf16.mxu0 0
  %175 = vmatmul.mubr.bf16.gmra.mxu0 %v65
  %v176 = vpop.f32.mrf.mxu0
  %v177 = vadd.f32 %v44, %v176
  %v178 = vpop.f32.mrf.mxu0
  %v179 = vpop.f32.mrf.mxu0
  %v180 = vadd.f32 %v44, %v179
  %v181 = vpop.f32.mrf.mxu0
  %182 = vdwg.mxu0
  %183 = vst [vmem:[%s3] sm:$0xff] %v153
  %184 = vst [vmem:[%s3 + $0x8] sm:$0xff] %v156
  %185 = vst [vmem:[%s3 + $0x10] sm:$0xff] %v161
  %186 = vst [vmem:[%s3 + $0x18] sm:$0xff] %v164
  %187 = vst [vmem:[%s3 + $0x20] sm:$0xff] %v169
  %188 = vst [vmem:[%s3 + $0x28] sm:$0xff] %v172
  %189 = vst [vmem:[%s3 + $0x30] sm:$0xff] %v177
  %190 = vst [vmem:[%s3 + $0x38] sm:$0xff] %v180
  // Predicated region
  $region14: #{rnn_model_forward.3} parent=0 // pred_check
    _
  $region15: #{rnn_model_forward.3} parent=0 // pred_check_branch
    %192 = sbr.rel (0) target = $region17
  $region16: #{rnn_model_forward.3} parent=0 // pred_region
    _
  $region17: #{rnn_model_forward.3} parent=0 // pred_fallthru
    _
  // Predicated region
  $region18: #{rnn_model_forward.3} parent=0 // pred_check
    _
  $region19: #{rnn_model_forward.3} parent=0 // pred_check_branch
    %194 = sbr.rel (0) target = $region21
  $region20: #{rnn_model_forward.3} parent=0 // pred_region
    _
  $region21: #{rnn_model_forward.3} parent=0 // pred_fallthru
    _

// kernel: rnn_model_forward.2
$region0: #{rnn_model_forward.2}
  #allocation0 [shape = 'u32[]', space=smem, size = 0x4, offset = 0x4, fixed_abs, tag = 'smem constant byte address 0x4 - core index']
  #allocation1 [shape = 'u32[144,128]{1,0:T(1,128)}', space=vmem, size = 0x12000, scoped, tag = 'internal scratch']
  #allocation2 [shape = 'f32[8,128]{1,0:T(8,128)}', space=vmem, size = 0x1000, scoped, tag = 'scratch operand']
  %s0 = inlined_call_operand.vmem [shape: bf16[8,8,128], index: 0, kind: input, shape index: {}]
  %s1 = inlined_call_operand.vmem [shape: f32[8,128], index: 1, kind: input, shape index: {}]
  %s2 = inlined_call_operand.vmem [shape: f32[128,128], index: 2, kind: input, shape index: {}]
  %s3 = inlined_call_operand.vmem [shape: f32[1,128], index: 3, kind: input, shape index: {}]
  %s4 = inlined_call_operand.vmem [shape: bf16[8,8,128], index: 4, kind: output, shape index: {0}]
  %s5 = inlined_call_operand.vmem [shape: f32[8,128], index: 5, kind: output, shape index: {1}]
  %6 = xla_tuple %s4, %s5
  %s7 = sld [smem:[#allocation0]]
  $region38: #{rnn_model_forward.2} parent=0
    _
  %s9 = ssub.s32 1, %s7
  %s10 = scalar_select 0, %s9, %s7
  // Predicated region
  $region2: #{rnn_model_forward.2} parent=0 // pred_check
    _
  $region3: #{rnn_model_forward.2} parent=0 // pred_check_branch
    %12 = sbr.rel (0) target = $region5
  $region4: #{rnn_model_forward.2} parent=0 // pred_region
    _
  $region5: #{rnn_model_forward.2} parent=0 // pred_fallthru
    _
  // Predicated region
  $region6: #{rnn_model_forward.2} parent=0 // pred_check
    _
  $region7: #{rnn_model_forward.2} parent=0 // pred_check_branch
    %14 = sbr.rel (0) target = $region9
  $region8: #{rnn_model_forward.2} parent=0 // pred_region
    _
  $region9: #{rnn_model_forward.2} parent=0 // pred_fallthru
    _
  // Predicated region
  $region10: #{rnn_model_forward.2} parent=0 // pred_check
    _
  $region11: #{rnn_model_forward.2} parent=0 // pred_check_branch
    %16 = sbr.rel (0) target = $region13
  $region12: #{rnn_model_forward.2} parent=0 // pred_region
    _
  $region13: #{rnn_model_forward.2} parent=0 // pred_fallthru
    _
  // Predicated region
  $region14: #{rnn_model_forward.2} parent=0 // pred_check
    _
  $region15: #{rnn_model_forward.2} parent=0 // pred_check_branch
    %18 = sbr.rel (0) target = $region17
  $region16: #{rnn_model_forward.2} parent=0 // pred_region
    _
  $region17: #{rnn_model_forward.2} parent=0 // pred_fallthru
    _
  %p19 = scmp.eq.s32.totalorder 0, 0
  // Predicated region
  $region18: #{rnn_model_forward.2} parent=0 // pred_check
    %p20 = pneg %p19
  $region19: #{rnn_model_forward.2} parent=0 // pred_check_branch
    %22 = sbr.rel (%p20) target = $region21
  $region20: #{rnn_model_forward.2} parent=0 // pred_region
    %v23 = vld [vmem:[%s1] sm:$0xff]
    %24 = vst [vmem:[#allocation2] sm:$0xff] %v23
  $region21: #{rnn_model_forward.2} parent=0 // pred_fallthru
    _
  %v25 = vld [vmem:[%s0] sm:$0xf]
  %v26 = vunpack.c.l.bf16 %v25
  %v27 = vld [vmem:[#allocation2] sm:$0xff]
  %v28 = vld [vmem:[%s2] sm:$0xff]
  %v29 = vld [vmem:[%s2 + $0x8] sm:$0xff]
  %v30 = vld [vmem:[%s2 + $0x10] sm:$0xff]
  %v31 = vld [vmem:[%s2 + $0x18] sm:$0xff]
  %v32 = vld [vmem:[%s2 + $0x20] sm:$0xff]
  %v33 = vld [vmem:[%s2 + $0x28] sm:$0xff]
  %v34 = vld [vmem:[%s2 + $0x30] sm:$0xff]
  %v35 = vld [vmem:[%s2 + $0x38] sm:$0xff]
  %v36 = vld [vmem:[%s2 + $0x40] sm:$0xff]
  %v37 = vld [vmem:[%s2 + $0x48] sm:$0xff]
  %v38 = vld [vmem:[%s2 + $0x50] sm:$0xff]
  %v39 = vld [vmem:[%s2 + $0x58] sm:$0xff]
  %v40 = vld [vmem:[%s2 + $0x60] sm:$0xff]
  %v41 = vld [vmem:[%s2 + $0x68] sm:$0xff]
  %v42 = vld [vmem:[%s2 + $0x70] sm:$0xff]
  %v43 = vld [vmem:[%s2 + $0x78] sm:$0xff]
  %44 = vmatprep.subr.mxu0 0.0
  %45 = vmatpush1.msra.mxu0 %v43
  %46 = vmatprep.subr.mxu0 0.0
  %47 = vmatpush1.msra.mxu0 %v42
  %48 = vmatprep.subr.mxu0 0.0
  %49 = vmatpush1.msra.mxu0 %v41
  %50 = vmatprep.subr.mxu0 0.0
  %51 = vmatpush1.msra.mxu0 %v40
  %52 = vmatprep.subr.mxu0 0.0
  %53 = vmatpush1.msra.mxu0 %v39
  %54 = vmatprep.subr.mxu0 0.0
  %55 = vmatpush1.msra.mxu0 %v38
  %56 = vmatprep.subr.mxu0 0.0
  %57 = vmatpush1.msra.mxu0 %v37
  %58 = vmatprep.subr.mxu0 0.0
  %59 = vmatpush1.msra.mxu0 %v36
  %60 = vmatprep.subr.mxu0 0.0
  %61 = vmatpush1.msra.mxu0 %v35
  %62 = vmatprep.subr.mxu0 0.0
  %63 = vmatpush1.msra.mxu0 %v34
  %64 = vmatprep.subr.mxu0 0.0
  %65 = vmatpush1.msra.mxu0 %v33
  %66 = vmatprep.subr.mxu0 0.0
  %67 = vmatpush1.msra.mxu0 %v32
  %68 = vmatprep.subr.mxu0 0.0
  %69 = vmatpush1.msra.mxu0 %v31
  %70 = vmatprep.subr.mxu0 0.0
  %71 = vmatpush1.msra.mxu0 %v30
  %72 = vmatprep.subr.mxu0 0.0
  %73 = vmatpush1.msra.mxu0 %v29
  %74 = vmatprep.subr.mxu0 0.0
  %75 = vmatpush1.msra.mxu0 %v28
  %76 = vmatprep.subr.mxu0 0.0
  %77 = vmatpush2.msra.mxu0 0.0
  %78 = vmatprep.subr.mxu0 0.0
  %79 = vmatpush2.msra.mxu0 0.0
  %80 = vmatprep.subr.mxu0 0.0
  %81 = vmatpush2.msra.mxu0 0.0
  %82 = vmatprep.subr.mxu0 0.0
  %83 = vmatpush2.msra.mxu0 0.0
  %84 = vmatprep.subr.mxu0 0.0
  %85 = vmatpush2.msra.mxu0 0.0
  %86 = vmatprep.subr.mxu0 0.0
  %87 = vmatpush2.msra.mxu0 0.0
  %88 = vmatprep.subr.mxu0 0.0
  %89 = vmatpush2.msra.mxu0 0.0
  %90 = vmatprep.subr.mxu0 0.0
  %91 = vmatpush2.msra.mxu0 0.0
  %92 = vmatprep.subr.mxu0 0.0
  %93 = vmatpush2.msra.mxu0 0.0
  %94 = vmatprep.subr.mxu0 0.0
  %95 = vmatpush2.msra.mxu0 0.0
  %96 = vmatprep.subr.mxu0 0.0
  %97 = vmatpush2.msra.mxu0 0.0
  %98 = vmatprep.subr.mxu0 0.0
  %99 = vmatpush2.msra.mxu0 0.0
  %100 = vmatprep.subr.mxu0 0.0
  %101 = vmatpush2.msra.mxu0 0.0
  %102 = vmatprep.subr.mxu0 0.0
  %103 = vmatpush2.msra.mxu0 0.0
  %104 = vmatprep.subr.mxu0 0.0
  %105 = vmatpush2.msra.mxu0 0.0
  %106 = vmatprep.subr.mxu0 0.0
  %107 = vmatpush2.msra.mxu0 0.0
  %108 = vmatprep.mubr.f32.mxu0 0.0
  %109 = vmatmul.mubr.f32.gmra.mxu0 %v27
  %v110 = vpop.f32.mrf.mxu0
  %v111 = vadd.f32 0.0, %v110
  %v112 = vpop.f32.mrf.mxu0
  %113 = vdwg.mxu0
  %v114 = vadd.f32 %v26, %v111
  %v115 = vld [vmem:[%s3] sm:$0x1]
  %v117 = vlaneseq
  %v118 = vshrl.u32 %v117, 7
  %v119 = vsub.s32 0, %v118
  %v120 = vrot.slane %v115, %v119
  %v122 = vadd.f32 %v114, %v120
  %v123 = vtanh.pop %v122
  %124 = vst [vmem:[#allocation2] sm:$0xff] %v123
  %v125 = vpack.c.bf16 %v123, %v123
  %126 = vst [vmem:[%s4] sm:$0xf] %v125
  %s127 = scalar_lea.vmem %s0, 4
  %v128 = vld [vmem:[%s127] sm:$0xf]
  %v129 = vunpack.c.l.bf16 %v128
  %v130 = vld [vmem:[#allocation2] sm:$0xff]
  %v131 = vld [vmem:[%s2] sm:$0xff]
  %v132 = vld [vmem:[%s2 + $0x8] sm:$0xff]
  %v133 = vld [vmem:[%s2 + $0x10] sm:$0xff]
  %v134 = vld [vmem:[%s2 + $0x18] sm:$0xff]
  %v135 = vld [vmem:[%s2 + $0x20] sm:$0xff]
  %v136 = vld [vmem:[%s2 + $0x28] sm:$0xff]
  %v137 = vld [vmem:[%s2 + $0x30] sm:$0xff]
  %v138 = vld [vmem:[%s2 + $0x38] sm:$0xff]
  %v139 = vld [vmem:[%s2 + $0x40] sm:$0xff]
  %v140 = vld [vmem:[%s2 + $0x48] sm:$0xff]
  %v141 = vld [vmem:[%s2 + $0x50] sm:$0xff]
  %v142 = vld [vmem:[%s2 + $0x58] sm:$0xff]
  %v143 = vld [vmem:[%s2 + $0x60] sm:$0xff]
  %v144 = vld [vmem:[%s2 + $0x68] sm:$0xff]
  %v145 = vld [vmem:[%s2 + $0x70] sm:$0xff]
  %v146 = vld [vmem:[%s2 + $0x78] sm:$0xff]
  %147 = vmatprep.subr.mxu0 0.0
  %148 = vmatpush1.msra.mxu0 %v146
  %149 = vmatprep.subr.mxu0 0.0
  %150 = vmatpush1.msra.mxu0 %v145
  %151 = vmatprep.subr.mxu0 0.0
  %152 = vmatpush1.msra.mxu0 %v144
  %153 = vmatprep.subr.mxu0 0.0
  %154 = vmatpush1.msra.mxu0 %v143
  %155 = vmatprep.subr.mxu0 0.0
  %156 = vmatpush1.msra.mxu0 %v142
  %157 = vmatprep.subr.mxu0 0.0
  %158 = vmatpush1.msra.mxu0 %v141
  %159 = vmatprep.subr.mxu0 0.0
  %160 = vmatpush1.msra.mxu0 %v140
  %161 = vmatprep.subr.mxu0 0.0
  %162 = vmatpush1.msra.mxu0 %v139
  %163 = vmatprep.subr.mxu0 0.0
  %164 = vmatpush1.msra.mxu0 %v138
  %165 = vmatprep.subr.mxu0 0.0
  %166 = vmatpush1.msra.mxu0 %v137
  %167 = vmatprep.subr.mxu0 0.0
  %168 = vmatpush1.msra.mxu0 %v136
  %169 = vmatprep.subr.mxu0 0.0
  %170 = vmatpush1.msra.mxu0 %v135
  %171 = vmatprep.subr.mxu0 0.0
  %172 = vmatpush1.msra.mxu0 %v134
  %173 = vmatprep.subr.mxu0 0.0
  %174 = vmatpush1.msra.mxu0 %v133
  %175 = vmatprep.subr.mxu0 0.0
  %176 = vmatpush1.msra.mxu0 %v132
  %177 = vmatprep.subr.mxu0 0.0
  %178 = vmatpush1.msra.mxu0 %v131
  %179 = vmatprep.subr.mxu0 0.0
  %180 = vmatpush2.msra.mxu0 0.0
  %181 = vmatprep.subr.mxu0 0.0
  %182 = vmatpush2.msra.mxu0 0.0
  %183 = vmatprep.subr.mxu0 0.0
  %184 = vmatpush2.msra.mxu0 0.0
  %185 = vmatprep.subr.mxu0 0.0
  %186 = vmatpush2.msra.mxu0 0.0
  %187 = vmatprep.subr.mxu0 0.0
  %188 = vmatpush2.msra.mxu0 0.0
  %189 = vmatprep.subr.mxu0 0.0
  %190 = vmatpush2.msra.mxu0 0.0
  %191 = vmatprep.subr.mxu0 0.0
  %192 = vmatpush2.msra.mxu0 0.0
  %193 = vmatprep.subr.mxu0 0.0
  %194 = vmatpush2.msra.mxu0 0.0
  %195 = vmatprep.subr.mxu0 0.0
  %196 = vmatpush2.msra.mxu0 0.0
  %197 = vmatprep.subr.mxu0 0.0
  %198 = vmatpush2.msra.mxu0 0.0
  %199 = vmatprep.subr.mxu0 0.0
  %200 = vmatpush2.msra.mxu0 0.0
  %201 = vmatprep.subr.mxu0 0.0
  %202 = vmatpush2.msra.mxu0 0.0
  %203 = vmatprep.subr.mxu0 0.0
  %204 = vmatpush2.msra.mxu0 0.0
  %205 = vmatprep.subr.mxu0 0.0
  %206 = vmatpush2.msra.mxu0 0.0
  %207 = vmatprep.subr.mxu0 0.0
  %208 = vmatpush2.msra.mxu0 0.0
  %209 = vmatprep.subr.mxu0 0.0
  %210 = vmatpush2.msra.mxu0 0.0
  %211 = vmatprep.mubr.f32.mxu0 0.0
  %212 = vmatmul.mubr.f32.gmra.mxu0 %v130
  %v213 = vpop.f32.mrf.mxu0
  %v214 = vadd.f32 0.0, %v213
  %v215 = vpop.f32.mrf.mxu0
  %216 = vdwg.mxu0
  %v217 = vadd.f32 %v129, %v214
  %v218 = vld [vmem:[%s3] sm:$0x1]
  %v220 = vlaneseq
  %v221 = vshrl.u32 %v220, 7
  %v222 = vsub.s32 0, %v221
  %v223 = vrot.slane %v218, %v222
  %v225 = vadd.f32 %v217, %v223
  %v226 = vtanh.pop %v225
  %227 = vst [vmem:[#allocation2] sm:$0xff] %v226
  %v228 = vpack.c.bf16 %v226, %v226
  %s229 = scalar_lea.vmem %s4, 4
  %230 = vst [vmem:[%s229] sm:$0xf] %v228
  %s231 = scalar_lea.vmem %s0, 8
  %v232 = vld [vmem:[%s231] sm:$0xf]
  %v233 = vunpack.c.l.bf16 %v232
  %v234 = vld [vmem:[#allocation2] sm:$0xff]
  %v235 = vld [vmem:[%s2] sm:$0xff]
  %v236 = vld [vmem:[%s2 + $0x8] sm:$0xff]
  %v237 = vld [vmem:[%s2 + $0x10] sm:$0xff]
  %v238 = vld [vmem:[%s2 + $0x18] sm:$0xff]
  %v239 = vld [vmem:[%s2 + $0x20] sm:$0xff]
  %v240 = vld [vmem:[%s2 + $0x28] sm:$0xff]
  %v241 = vld [vmem:[%s2 + $0x30] sm:$0xff]
  %v242 = vld [vmem:[%s2 + $0x38] sm:$0xff]
  %v243 = vld [vmem:[%s2 + $0x40] sm:$0xff]
  %v244 = vld [vmem:[%s2 + $0x48] sm:$0xff]
  %v245 = vld [vmem:[%s2 + $0x50] sm:$0xff]
  %v246 = vld [vmem:[%s2 + $0x58] sm:$0xff]
  %v247 = vld [vmem:[%s2 + $0x60] sm:$0xff]
  %v248 = vld [vmem:[%s2 + $0x68] sm:$0xff]
  %v249 = vld [vmem:[%s2 + $0x70] sm:$0xff]
  %v250 = vld [vmem:[%s2 + $0x78] sm:$0xff]
  %251 = vmatprep.subr.mxu0 0.0
  %252 = vmatpush1.msra.mxu0 %v250
  %253 = vmatprep.subr.mxu0 0.0
  %254 = vmatpush1.msra.mxu0 %v249
  %255 = vmatprep.subr.mxu0 0.0
  %256 = vmatpush1.msra.mxu0 %v248
  %257 = vmatprep.subr.mxu0 0.0
  %258 = vmatpush1.msra.mxu0 %v247
  %259 = vmatprep.subr.mxu0 0.0
  %260 = vmatpush1.msra.mxu0 %v246
  %261 = vmatprep.subr.mxu0 0.0
  %262 = vmatpush1.msra.mxu0 %v245
  %263 = vmatprep.subr.mxu0 0.0
  %264 = vmatpush1.msra.mxu0 %v244
  %265 = vmatprep.subr.mxu0 0.0
  %266 = vmatpush1.msra.mxu0 %v243
  %267 = vmatprep.subr.mxu0 0.0
  %268 = vmatpush1.msra.mxu0 %v242
  %269 = vmatprep.subr.mxu0 0.0
  %270 = vmatpush1.msra.mxu0 %v241
  %271 = vmatprep.subr.mxu0 0.0
  %272 = vmatpush1.msra.mxu0 %v240
  %273 = vmatprep.subr.mxu0 0.0
  %274 = vmatpush1.msra.mxu0 %v239
  %275 = vmatprep.subr.mxu0 0.0
  %276 = vmatpush1.msra.mxu0 %v238
  %277 = vmatprep.subr.mxu0 0.0
  %278 = vmatpush1.msra.mxu0 %v237
  %279 = vmatprep.subr.mxu0 0.0
  %280 = vmatpush1.msra.mxu0 %v236
  %281 = vmatprep.subr.mxu0 0.0
  %282 = vmatpush1.msra.mxu0 %v235
  %283 = vmatprep.subr.mxu0 0.0
  %284 = vmatpush2.msra.mxu0 0.0
  %285 = vmatprep.subr.mxu0 0.0
  %286 = vmatpush2.msra.mxu0 0.0
  %287 = vmatprep.subr.mxu0 0.0
  %288 = vmatpush2.msra.mxu0 0.0
  %289 = vmatprep.subr.mxu0 0.0
  %290 = vmatpush2.msra.mxu0 0.0
  %291 = vmatprep.subr.mxu0 0.0
  %292 = vmatpush2.msra.mxu0 0.0
  %293 = vmatprep.subr.mxu0 0.0
  %294 = vmatpush2.msra.mxu0 0.0
  %295 = vmatprep.subr.mxu0 0.0
  %296 = vmatpush2.msra.mxu0 0.0
  %297 = vmatprep.subr.mxu0 0.0
  %298 = vmatpush2.msra.mxu0 0.0
  %299 = vmatprep.subr.mxu0 0.0
  %300 = vmatpush2.msra.mxu0 0.0
  %301 = vmatprep.subr.mxu0 0.0
  %302 = vmatpush2.msra.mxu0 0.0
  %303 = vmatprep.subr.mxu0 0.0
  %304 = vmatpush2.msra.mxu0 0.0
  %305 = vmatprep.subr.mxu0 0.0
  %306 = vmatpush2.msra.mxu0 0.0
  %307 = vmatprep.subr.mxu0 0.0
  %308 = vmatpush2.msra.mxu0 0.0
  %309 = vmatprep.subr.mxu0 0.0
  %310 = vmatpush2.msra.mxu0 0.0
  %311 = vmatprep.subr.mxu0 0.0
  %312 = vmatpush2.msra.mxu0 0.0
  %313 = vmatprep.subr.mxu0 0.0
  %314 = vmatpush2.msra.mxu0 0.0
  %315 = vmatprep.mubr.f32.mxu0 0.0
  %316 = vmatmul.mubr.f32.gmra.mxu0 %v234
  %v317 = vpop.f32.mrf.mxu0
  %v318 = vadd.f32 0.0, %v317
  %v319 = vpop.f32.mrf.mxu0
  %320 = vdwg.mxu0
  %v321 = vadd.f32 %v233, %v318
  %v322 = vld [vmem:[%s3] sm:$0x1]
  %v324 = vlaneseq
  %v325 = vshrl.u32 %v324, 7
  %v326 = vsub.s32 0, %v325
  %v327 = vrot.slane %v322, %v326
  %v329 = vadd.f32 %v321, %v327
  %v330 = vtanh.pop %v329
  %331 = vst [vmem:[#allocation2] sm:$0xff] %v330
  %v332 = vpack.c.bf16 %v330, %v330
  %s333 = scalar_lea.vmem %s4, 8
  %334 = vst [vmem:[%s333] sm:$0xf] %v332
  %s335 = scalar_lea.vmem %s0, 12
  %v336 = vld [vmem:[%s335] sm:$0xf]
  %v337 = vunpack.c.l.bf16 %v336
  %v338 = vld [vmem:[#allocation2] sm:$0xff]
  %v339 = vld [vmem:[%s2] sm:$0xff]
  %v340 = vld [vmem:[%s2 + $0x8] sm:$0xff]
  %v341 = vld [vmem:[%s2 + $0x10] sm:$0xff]
  %v342 = vld [vmem:[%s2 + $0x18] sm:$0xff]
  %v343 = vld [vmem:[%s2 + $0x20] sm:$0xff]
  %v344 = vld [vmem:[%s2 + $0x28] sm:$0xff]
  %v345 = vld [vmem:[%s2 + $0x30] sm:$0xff]
  %v346 = vld [vmem:[%s2 + $0x38] sm:$0xff]
  %v347 = vld [vmem:[%s2 + $0x40] sm:$0xff]
  %v348 = vld [vmem:[%s2 + $0x48] sm:$0xff]
  %v349 = vld [vmem:[%s2 + $0x50] sm:$0xff]
  %v350 = vld [vmem:[%s2 + $0x58] sm:$0xff]
  %v351 = vld [vmem:[%s2 + $0x60] sm:$0xff]
  %v352 = vld [vmem:[%s2 + $0x68] sm:$0xff]
  %v353 = vld [vmem:[%s2 + $0x70] sm:$0xff]
  %v354 = vld [vmem:[%s2 + $0x78] sm:$0xff]
  %355 = vmatprep.subr.mxu0 0.0
  %356 = vmatpush1.msra.mxu0 %v354
  %357 = vmatprep.subr.mxu0 0.0
  %358 = vmatpush1.msra.mxu0 %v353
  %359 = vmatprep.subr.mxu0 0.0
  %360 = vmatpush1.msra.mxu0 %v352
  %361 = vmatprep.subr.mxu0 0.0
  %362 = vmatpush1.msra.mxu0 %v351
  %363 = vmatprep.subr.mxu0 0.0
  %364 = vmatpush1.msra.mxu0 %v350
  %365 = vmatprep.subr.mxu0 0.0
  %366 = vmatpush1.msra.mxu0 %v349
  %367 = vmatprep.subr.mxu0 0.0
  %368 = vmatpush1.msra.mxu0 %v348
  %369 = vmatprep.subr.mxu0 0.0
  %370 = vmatpush1.msra.mxu0 %v347
  %371 = vmatprep.subr.mxu0 0.0
  %372 = vmatpush1.msra.mxu0 %v346
  %373 = vmatprep.subr.mxu0 0.0
  %374 = vmatpush1.msra.mxu0 %v345
  %375 = vmatprep.subr.mxu0 0.0
  %376 = vmatpush1.msra.mxu0 %v344
  %377 = vmatprep.subr.mxu0 0.0
  %378 = vmatpush1.msra.mxu0 %v343
  %379 = vmatprep.subr.mxu0 0.0
  %380 = vmatpush1.msra.mxu0 %v342
  %381 = vmatprep.subr.mxu0 0.0
  %382 = vmatpush1.msra.mxu0 %v341
  %383 = vmatprep.subr.mxu0 0.0
  %384 = vmatpush1.msra.mxu0 %v340
  %385 = vmatprep.subr.mxu0 0.0
  %386 = vmatpush1.msra.mxu0 %v339
  %387 = vmatprep.subr.mxu0 0.0
  %388 = vmatpush2.msra.mxu0 0.0
  %389 = vmatprep.subr.mxu0 0.0
  %390 = vmatpush2.msra.mxu0 0.0
  %391 = vmatprep.subr.mxu0 0.0
  %392 = vmatpush2.msra.mxu0 0.0
  %393 = vmatprep.subr.mxu0 0.0
  %394 = vmatpush2.msra.mxu0 0.0
  %395 = vmatprep.subr.mxu0 0.0
  %396 = vmatpush2.msra.mxu0 0.0
  %397 = vmatprep.subr.mxu0 0.0
  %398 = vmatpush2.msra.mxu0 0.0
  %399 = vmatprep.subr.mxu0 0.0
  %400 = vmatpush2.msra.mxu0 0.0
  %401 = vmatprep.subr.mxu0 0.0
  %402 = vmatpush2.msra.mxu0 0.0
  %403 = vmatprep.subr.mxu0 0.0
  %404 = vmatpush2.msra.mxu0 0.0
  %405 = vmatprep.subr.mxu0 0.0
  %406 = vmatpush2.msra.mxu0 0.0
  %407 = vmatprep.subr.mxu0 0.0
  %408 = vmatpush2.msra.mxu0 0.0
  %409 = vmatprep.subr.mxu0 0.0
  %410 = vmatpush2.msra.mxu0 0.0
  %411 = vmatprep.subr.mxu0 0.0
  %412 = vmatpush2.msra.mxu0 0.0
  %413 = vmatprep.subr.mxu0 0.0
  %414 = vmatpush2.msra.mxu0 0.0
  %415 = vmatprep.subr.mxu0 0.0
  %416 = vmatpush2.msra.mxu0 0.0
  %417 = vmatprep.subr.mxu0 0.0
  %418 = vmatpush2.msra.mxu0 0.0
  %419 = vmatprep.mubr.f32.mxu0 0.0
  %420 = vmatmul.mubr.f32.gmra.mxu0 %v338
  %v421 = vpop.f32.mrf.mxu0
  %v422 = vadd.f32 0.0, %v421
  %v423 = vpop.f32.mrf.mxu0
  %424 = vdwg.mxu0
  %v425 = vadd.f32 %v337, %v422
  %v426 = vld [vmem:[%s3] sm:$0x1]
  %v428 = vlaneseq
  %v429 = vshrl.u32 %v428, 7
  %v430 = vsub.s32 0, %v429
  %v431 = vrot.slane %v426, %v430
  %v433 = vadd.f32 %v425, %v431
  %v434 = vtanh.pop %v433
  %435 = vst [vmem:[#allocation2] sm:$0xff] %v434
  %v436 = vpack.c.bf16 %v434, %v434
  %s437 = scalar_lea.vmem %s4, 12
  %438 = vst [vmem:[%s437] sm:$0xf] %v436
  %s439 = scalar_lea.vmem %s0, 16
  %v440 = vld [vmem:[%s439] sm:$0xf]
  %v441 = vunpack.c.l.bf16 %v440
  %v442 = vld [vmem:[#allocation2] sm:$0xff]
  %v443 = vld [vmem:[%s2] sm:$0xff]
  %v444 = vld [vmem:[%s2 + $0x8] sm:$0xff]
  %v445 = vld [vmem:[%s2 + $0x10] sm:$0xff]
  %v446 = vld [vmem:[%s2 + $0x18] sm:$0xff]
  %v447 = vld [vmem:[%s2 + $0x20] sm:$0xff]
  %v448 = vld [vmem:[%s2 + $0x28] sm:$0xff]
  %v449 = vld [vmem:[%s2 + $0x30] sm:$0xff]
  %v450 = vld [vmem:[%s2 + $0x38] sm:$0xff]
  %v451 = vld [vmem:[%s2 + $0x40] sm:$0xff]
  %v452 = vld [vmem:[%s2 + $0x48] sm:$0xff]
  %v453 = vld [vmem:[%s2 + $0x50] sm:$0xff]
  %v454 = vld [vmem:[%s2 + $0x58] sm:$0xff]
  %v455 = vld [vmem:[%s2 + $0x60] sm:$0xff]
  %v456 = vld [vmem:[%s2 + $0x68] sm:$0xff]
  %v457 = vld [vmem:[%s2 + $0x70] sm:$0xff]
  %v458 = vld [vmem:[%s2 + $0x78] sm:$0xff]
  %459 = vmatprep.subr.mxu0 0.0
  %460 = vmatpush1.msra.mxu0 %v458
  %461 = vmatprep.subr.mxu0 0.0
  %462 = vmatpush1.msra.mxu0 %v457
  %463 = vmatprep.subr.mxu0 0.0
  %464 = vmatpush1.msra.mxu0 %v456
  %465 = vmatprep.subr.mxu0 0.0
  %466 = vmatpush1.msra.mxu0 %v455
  %467 = vmatprep.subr.mxu0 0.0
  %468 = vmatpush1.msra.mxu0 %v454
  %469 = vmatprep.subr.mxu0 0.0
  %470 = vmatpush1.msra.mxu0 %v453
  %471 = vmatprep.subr.mxu0 0.0
  %472 = vmatpush1.msra.mxu0 %v452
  %473 = vmatprep.subr.mxu0 0.0
  %474 = vmatpush1.msra.mxu0 %v451
  %475 = vmatprep.subr.mxu0 0.0
  %476 = vmatpush1.msra.mxu0 %v450
  %477 = vmatprep.subr.mxu0 0.0
  %478 = vmatpush1.msra.mxu0 %v449
  %479 = vmatprep.subr.mxu0 0.0
  %480 = vmatpush1.msra.mxu0 %v448
  %481 = vmatprep.subr.mxu0 0.0
  %482 = vmatpush1.msra.mxu0 %v447
  %483 = vmatprep.subr.mxu0 0.0
  %484 = vmatpush1.msra.mxu0 %v446
  %485 = vmatprep.subr.mxu0 0.0
  %486 = vmatpush1.msra.mxu0 %v445
  %487 = vmatprep.subr.mxu0 0.0
  %488 = vmatpush1.msra.mxu0 %v444
  %489 = vmatprep.subr.mxu0 0.0
  %490 = vmatpush1.msra.mxu0 %v443
  %491 = vmatprep.subr.mxu0 0.0
  %492 = vmatpush2.msra.mxu0 0.0
  %493 = vmatprep.subr.mxu0 0.0
  %494 = vmatpush2.msra.mxu0 0.0
  %495 = vmatprep.subr.mxu0 0.0
  %496 = vmatpush2.msra.mxu0 0.0
  %497 = vmatprep.subr.mxu0 0.0
  %498 = vmatpush2.msra.mxu0 0.0
  %499 = vmatprep.subr.mxu0 0.0
  %500 = vmatpush2.msra.mxu0 0.0
  %501 = vmatprep.subr.mxu0 0.0
  %502 = vmatpush2.msra.mxu0 0.0
  %503 = vmatprep.subr.mxu0 0.0
  %504 = vmatpush2.msra.mxu0 0.0
  %505 = vmatprep.subr.mxu0 0.0
  %506 = vmatpush2.msra.mxu0 0.0
  %507 = vmatprep.subr.mxu0 0.0
  %508 = vmatpush2.msra.mxu0 0.0
  %509 = vmatprep.subr.mxu0 0.0
  %510 = vmatpush2.msra.mxu0 0.0
  %511 = vmatprep.subr.mxu0 0.0
  %512 = vmatpush2.msra.mxu0 0.0
  %513 = vmatprep.subr.mxu0 0.0
  %514 = vmatpush2.msra.mxu0 0.0
  %515 = vmatprep.subr.mxu0 0.0
  %516 = vmatpush2.msra.mxu0 0.0
  %517 = vmatprep.subr.mxu0 0.0
  %518 = vmatpush2.msra.mxu0 0.0
  %519 = vmatprep.subr.mxu0 0.0
  %520 = vmatpush2.msra.mxu0 0.0
  %521 = vmatprep.subr.mxu0 0.0
  %522 = vmatpush2.msra.mxu0 0.0
  %523 = vmatprep.mubr.f32.mxu0 0.0
  %524 = vmatmul.mubr.f32.gmra.mxu0 %v442
  %v525 = vpop.f32.mrf.mxu0
  %v526 = vadd.f32 0.0, %v525
  %v527 = vpop.f32.mrf.mxu0
  %528 = vdwg.mxu0
  %v529 = vadd.f32 %v441, %v526
  %v530 = vld [vmem:[%s3] sm:$0x1]
  %v532 = vlaneseq
  %v533 = vshrl.u32 %v532, 7
  %v534 = vsub.s32 0, %v533
  %v535 = vrot.slane %v530, %v534
  %v537 = vadd.f32 %v529, %v535
  %v538 = vtanh.pop %v537
  %539 = vst [vmem:[#allocation2] sm:$0xff] %v538
  %v540 = vpack.c.bf16 %v538, %v538
  %s541 = scalar_lea.vmem %s4, 16
  %542 = vst [vmem:[%s541] sm:$0xf] %v540
  %s543 = scalar_lea.vmem %s0, 20
  %v544 = vld [vmem:[%s543] sm:$0xf]
  %v545 = vunpack.c.l.bf16 %v544
  %v546 = vld [vmem:[#allocation2] sm:$0xff]
  %v547 = vld [vmem:[%s2] sm:$0xff]
  %v548 = vld [vmem:[%s2 + $0x8] sm:$0xff]
  %v549 = vld [vmem:[%s2 + $0x10] sm:$0xff]
  %v550 = vld [vmem:[%s2 + $0x18] sm:$0xff]
  %v551 = vld [vmem:[%s2 + $0x20] sm:$0xff]
  %v552 = vld [vmem:[%s2 + $0x28] sm:$0xff]
  %v553 = vld [vmem:[%s2 + $0x30] sm:$0xff]
  %v554 = vld [vmem:[%s2 + $0x38] sm:$0xff]
  %v555 = vld [vmem:[%s2 + $0x40] sm:$0xff]
  %v556 = vld [vmem:[%s2 + $0x48] sm:$0xff]
  %v557 = vld [vmem:[%s2 + $0x50] sm:$0xff]
  %v558 = vld [vmem:[%s2 + $0x58] sm:$0xff]
  %v559 = vld [vmem:[%s2 + $0x60] sm:$0xff]
  %v560 = vld [vmem:[%s2 + $0x68] sm:$0xff]
  %v561 = vld [vmem:[%s2 + $0x70] sm:$0xff]
  %v562 = vld [vmem:[%s2 + $0x78] sm:$0xff]
  %563 = vmatprep.subr.mxu0 0.0
  %564 = vmatpush1.msra.mxu0 %v562
  %565 = vmatprep.subr.mxu0 0.0
  %566 = vmatpush1.msra.mxu0 %v561
  %567 = vmatprep.subr.mxu0 0.0
  %568 = vmatpush1.msra.mxu0 %v560
  %569 = vmatprep.subr.mxu0 0.0
  %570 = vmatpush1.msra.mxu0 %v559
  %571 = vmatprep.subr.mxu0 0.0
  %572 = vmatpush1.msra.mxu0 %v558
  %573 = vmatprep.subr.mxu0 0.0
  %574 = vmatpush1.msra.mxu0 %v557
  %575 = vmatprep.subr.mxu0 0.0
  %576 = vmatpush1.msra.mxu0 %v556
  %577 = vmatprep.subr.mxu0 0.0
  %578 = vmatpush1.msra.mxu0 %v555
  %579 = vmatprep.subr.mxu0 0.0
  %580 = vmatpush1.msra.mxu0 %v554
  %581 = vmatprep.subr.mxu0 0.0
  %582 = vmatpush1.msra.mxu0 %v553
  %583 = vmatprep.subr.mxu0 0.0
  %584 = vmatpush1.msra.mxu0 %v552
  %585 = vmatprep.subr.mxu0 0.0
  %586 = vmatpush1.msra.mxu0 %v551
  %587 = vmatprep.subr.mxu0 0.0
  %588 = vmatpush1.msra.mxu0 %v550
  %589 = vmatprep.subr.mxu0 0.0
  %590 = vmatpush1.msra.mxu0 %v549
  %591 = vmatprep.subr.mxu0 0.0
  %592 = vmatpush1.msra.mxu0 %v548
  %593 = vmatprep.subr.mxu0 0.0
  %594 = vmatpush1.msra.mxu0 %v547
  %595 = vmatprep.subr.mxu0 0.0
  %596 = vmatpush2.msra.mxu0 0.0
  %597 = vmatprep.subr.mxu0 0.0
  %598 = vmatpush2.msra.mxu0 0.0
  %599 = vmatprep.subr.mxu0 0.0
  %600 = vmatpush2.msra.mxu0 0.0
  %601 = vmatprep.subr.mxu0 0.0
  %602 = vmatpush2.msra.mxu0 0.0
  %603 = vmatprep.subr.mxu0 0.0
  %604 = vmatpush2.msra.mxu0 0.0
  %605 = vmatprep.subr.mxu0 0.0
  %606 = vmatpush2.msra.mxu0 0.0
  %607 = vmatprep.subr.mxu0 0.0
  %608 = vmatpush2.msra.mxu0 0.0
  %609 = vmatprep.subr.mxu0 0.0
  %610 = vmatpush2.msra.mxu0 0.0
  %611 = vmatprep.subr.mxu0 0.0
  %612 = vmatpush2.msra.mxu0 0.0
  %613 = vmatprep.subr.mxu0 0.0
  %614 = vmatpush2.msra.mxu0 0.0
  %615 = vmatprep.subr.mxu0 0.0
  %616 = vmatpush2.msra.mxu0 0.0
  %617 = vmatprep.subr.mxu0 0.0
  %618 = vmatpush2.msra.mxu0 0.0
  %619 = vmatprep.subr.mxu0 0.0
  %620 = vmatpush2.msra.mxu0 0.0
  %621 = vmatprep.subr.mxu0 0.0
  %622 = vmatpush2.msra.mxu0 0.0
  %623 = vmatprep.subr.mxu0 0.0
  %624 = vmatpush2.msra.mxu0 0.0
  %625 = vmatprep.subr.mxu0 0.0
  %626 = vmatpush2.msra.mxu0 0.0
  %627 = vmatprep.mubr.f32.mxu0 0.0
  %628 = vmatmul.mubr.f32.gmra.mxu0 %v546
  %v629 = vpop.f32.mrf.mxu0
  %v630 = vadd.f32 0.0, %v629
  %v631 = vpop.f32.mrf.mxu0
  %632 = vdwg.mxu0
  %v633 = vadd.f32 %v545, %v630
  %v634 = vld [vmem:[%s3] sm:$0x1]
  %v636 = vlaneseq
  %v637 = vshrl.u32 %v636, 7
  %v638 = vsub.s32 0, %v637
  %v639 = vrot.slane %v634, %v638
  %v641 = vadd.f32 %v633, %v639
  %v642 = vtanh.pop %v641
  %643 = vst [vmem:[#allocation2] sm:$0xff] %v642
  %v644 = vpack.c.bf16 %v642, %v642
  %s645 = scalar_lea.vmem %s4, 20
  %646 = vst [vmem:[%s645] sm:$0xf] %v644
  %s647 = scalar_lea.vmem %s0, 24
  %v648 = vld [vmem:[%s647] sm:$0xf]
  %v649 = vunpack.c.l.bf16 %v648
  %v650 = vld [vmem:[#allocation2] sm:$0xff]
  %v651 = vld [vmem:[%s2] sm:$0xff]
  %v652 = vld [vmem:[%s2 + $0x8] sm:$0xff]
  %v653 = vld [vmem:[%s2 + $0x10] sm:$0xff]
  %v654 = vld [vmem:[%s2 + $0x18] sm:$0xff]
  %v655 = vld [vmem:[%s2 + $0x20] sm:$0xff]
  %v656 = vld [vmem:[%s2 + $0x28] sm:$0xff]
  %v657 = vld [vmem:[%s2 + $0x30] sm:$0xff]
  %v658 = vld [vmem:[%s2 + $0x38] sm:$0xff]
  %v659 = vld [vmem:[%s2 + $0x40] sm:$0xff]
  %v660 = vld [vmem:[%s2 + $0x48] sm:$0xff]
  %v661 = vld [vmem:[%s2 + $0x50] sm:$0xff]
  %v662 = vld [vmem:[%s2 + $0x58] sm:$0xff]
  %v663 = vld [vmem:[%s2 + $0x60] sm:$0xff]
  %v664 = vld [vmem:[%s2 + $0x68] sm:$0xff]
  %v665 = vld [vmem:[%s2 + $0x70] sm:$0xff]
  %v666 = vld [vmem:[%s2 + $0x78] sm:$0xff]
  %667 = vmatprep.subr.mxu0 0.0
  %668 = vmatpush1.msra.mxu0 %v666
  %669 = vmatprep.subr.mxu0 0.0
  %670 = vmatpush1.msra.mxu0 %v665
  %671 = vmatprep.subr.mxu0 0.0
  %672 = vmatpush1.msra.mxu0 %v664
  %673 = vmatprep.subr.mxu0 0.0
  %674 = vmatpush1.msra.mxu0 %v663
  %675 = vmatprep.subr.mxu0 0.0
  %676 = vmatpush1.msra.mxu0 %v662
  %677 = vmatprep.subr.mxu0 0.0
  %678 = vmatpush1.msra.mxu0 %v661
  %679 = vmatprep.subr.mxu0 0.0
  %680 = vmatpush1.msra.mxu0 %v660
  %681 = vmatprep.subr.mxu0 0.0
  %682 = vmatpush1.msra.mxu0 %v659
  %683 = vmatprep.subr.mxu0 0.0
  %684 = vmatpush1.msra.mxu0 %v658
  %685 = vmatprep.subr.mxu0 0.0
  %686 = vmatpush1.msra.mxu0 %v657
  %687 = vmatprep.subr.mxu0 0.0
  %688 = vmatpush1.msra.mxu0 %v656
  %689 = vmatprep.subr.mxu0 0.0
  %690 = vmatpush1.msra.mxu0 %v655
  %691 = vmatprep.subr.mxu0 0.0
  %692 = vmatpush1.msra.mxu0 %v654
  %693 = vmatprep.subr.mxu0 0.0
  %694 = vmatpush1.msra.mxu0 %v653
  %695 = vmatprep.subr.mxu0 0.0
  %696 = vmatpush1.msra.mxu0 %v652
  %697 = vmatprep.subr.mxu0 0.0
  %698 = vmatpush1.msra.mxu0 %v651
  %699 = vmatprep.subr.mxu0 0.0
  %700 = vmatpush2.msra.mxu0 0.0
  %701 = vmatprep.subr.mxu0 0.0
  %702 = vmatpush2.msra.mxu0 0.0
  %703 = vmatprep.subr.mxu0 0.0
  %704 = vmatpush2.msra.mxu0 0.0
  %705 = vmatprep.subr.mxu0 0.0
  %706 = vmatpush2.msra.mxu0 0.0
  %707 = vmatprep.subr.mxu0 0.0
  %708 = vmatpush2.msra.mxu0 0.0
  %709 = vmatprep.subr.mxu0 0.0
  %710 = vmatpush2.msra.mxu0 0.0
  %711 = vmatprep.subr.mxu0 0.0
  %712 = vmatpush2.msra.mxu0 0.0
  %713 = vmatprep.subr.mxu0 0.0
  %714 = vmatpush2.msra.mxu0 0.0
  %715 = vmatprep.subr.mxu0 0.0
  %716 = vmatpush2.msra.mxu0 0.0
  %717 = vmatprep.subr.mxu0 0.0
  %718 = vmatpush2.msra.mxu0 0.0
  %719 = vmatprep.subr.mxu0 0.0
  %720 = vmatpush2.msra.mxu0 0.0
  %721 = vmatprep.subr.mxu0 0.0
  %722 = vmatpush2.msra.mxu0 0.0
  %723 = vmatprep.subr.mxu0 0.0
  %724 = vmatpush2.msra.mxu0 0.0
  %725 = vmatprep.subr.mxu0 0.0
  %726 = vmatpush2.msra.mxu0 0.0
  %727 = vmatprep.subr.mxu0 0.0
  %728 = vmatpush2.msra.mxu0 0.0
  %729 = vmatprep.subr.mxu0 0.0
  %730 = vmatpush2.msra.mxu0 0.0
  %731 = vmatprep.mubr.f32.mxu0 0.0
  %732 = vmatmul.mubr.f32.gmra.mxu0 %v650
  %v733 = vpop.f32.mrf.mxu0
  %v734 = vadd.f32 0.0, %v733
  %v735 = vpop.f32.mrf.mxu0
  %736 = vdwg.mxu0
  %v737 = vadd.f32 %v649, %v734
  %v738 = vld [vmem:[%s3] sm:$0x1]
  %v740 = vlaneseq
  %v741 = vshrl.u32 %v740, 7
  %v742 = vsub.s32 0, %v741
  %v743 = vrot.slane %v738, %v742
  %v745 = vadd.f32 %v737, %v743
  %v746 = vtanh.pop %v745
  %747 = vst [vmem:[#allocation2] sm:$0xff] %v746
  %v748 = vpack.c.bf16 %v746, %v746
  %s749 = scalar_lea.vmem %s4, 24
  %750 = vst [vmem:[%s749] sm:$0xf] %v748
  %s751 = scalar_lea.vmem %s0, 28
  %v752 = vld [vmem:[%s751] sm:$0xf]
  %v753 = vunpack.c.l.bf16 %v752
  %v754 = vld [vmem:[#allocation2] sm:$0xff]
  %v755 = vld [vmem:[%s2] sm:$0xff]
  %v756 = vld [vmem:[%s2 + $0x8] sm:$0xff]
  %v757 = vld [vmem:[%s2 + $0x10] sm:$0xff]
  %v758 = vld [vmem:[%s2 + $0x18] sm:$0xff]
  %v759 = vld [vmem:[%s2 + $0x20] sm:$0xff]
  %v760 = vld [vmem:[%s2 + $0x28] sm:$0xff]
  %v761 = vld [vmem:[%s2 + $0x30] sm:$0xff]
  %v762 = vld [vmem:[%s2 + $0x38] sm:$0xff]
  %v763 = vld [vmem:[%s2 + $0x40] sm:$0xff]
  %v764 = vld [vmem:[%s2 + $0x48] sm:$0xff]
  %v765 = vld [vmem:[%s2 + $0x50] sm:$0xff]
  %v766 = vld [vmem:[%s2 + $0x58] sm:$0xff]
  %v767 = vld [vmem:[%s2 + $0x60] sm:$0xff]
  %v768 = vld [vmem:[%s2 + $0x68] sm:$0xff]
  %v769 = vld [vmem:[%s2 + $0x70] sm:$0xff]
  %v770 = vld [vmem:[%s2 + $0x78] sm:$0xff]
  %771 = vmatprep.subr.mxu0 0.0
  %772 = vmatpush1.msra.mxu0 %v770
  %773 = vmatprep.subr.mxu0 0.0
  %774 = vmatpush1.msra.mxu0 %v769
  %775 = vmatprep.subr.mxu0 0.0
  %776 = vmatpush1.msra.mxu0 %v768
  %777 = vmatprep.subr.mxu0 0.0
  %778 = vmatpush1.msra.mxu0 %v767
  %779 = vmatprep.subr.mxu0 0.0
  %780 = vmatpush1.msra.mxu0 %v766
  %781 = vmatprep.subr.mxu0 0.0
  %782 = vmatpush1.msra.mxu0 %v765
  %783 = vmatprep.subr.mxu0 0.0
  %784 = vmatpush1.msra.mxu0 %v764
  %785 = vmatprep.subr.mxu0 0.0
  %786 = vmatpush1.msra.mxu0 %v763
  %787 = vmatprep.subr.mxu0 0.0
  %788 = vmatpush1.msra.mxu0 %v762
  %789 = vmatprep.subr.mxu0 0.0
  %790 = vmatpush1.msra.mxu0 %v761
  %791 = vmatprep.subr.mxu0 0.0
  %792 = vmatpush1.msra.mxu0 %v760
  %793 = vmatprep.subr.mxu0 0.0
  %794 = vmatpush1.msra.mxu0 %v759
  %795 = vmatprep.subr.mxu0 0.0
  %796 = vmatpush1.msra.mxu0 %v758
  %797 = vmatprep.subr.mxu0 0.0
  %798 = vmatpush1.msra.mxu0 %v757
  %799 = vmatprep.subr.mxu0 0.0
  %800 = vmatpush1.msra.mxu0 %v756
  %801 = vmatprep.subr.mxu0 0.0
  %802 = vmatpush1.msra.mxu0 %v755
  %803 = vmatprep.subr.mxu0 0.0
  %804 = vmatpush2.msra.mxu0 0.0
  %805 = vmatprep.subr.mxu0 0.0
  %806 = vmatpush2.msra.mxu0 0.0
  %807 = vmatprep.subr.mxu0 0.0
  %808 = vmatpush2.msra.mxu0 0.0
  %809 = vmatprep.subr.mxu0 0.0
  %810 = vmatpush2.msra.mxu0 0.0
  %811 = vmatprep.subr.mxu0 0.0
  %812 = vmatpush2.msra.mxu0 0.0
  %813 = vmatprep.subr.mxu0 0.0
  %814 = vmatpush2.msra.mxu0 0.0
  %815 = vmatprep.subr.mxu0 0.0
  %816 = vmatpush2.msra.mxu0 0.0
  %817 = vmatprep.subr.mxu0 0.0
  %818 = vmatpush2.msra.mxu0 0.0
  %819 = vmatprep.subr.mxu0 0.0
  %820 = vmatpush2.msra.mxu0 0.0
  %821 = vmatprep.subr.mxu0 0.0
  %822 = vmatpush2.msra.mxu0 0.0
  %823 = vmatprep.subr.mxu0 0.0
  %824 = vmatpush2.msra.mxu0 0.0
  %825 = vmatprep.subr.mxu0 0.0
  %826 = vmatpush2.msra.mxu0 0.0
  %827 = vmatprep.subr.mxu0 0.0
  %828 = vmatpush2.msra.mxu0 0.0
  %829 = vmatprep.subr.mxu0 0.0
  %830 = vmatpush2.msra.mxu0 0.0
  %831 = vmatprep.subr.mxu0 0.0
  %832 = vmatpush2.msra.mxu0 0.0
  %833 = vmatprep.subr.mxu0 0.0
  %834 = vmatpush2.msra.mxu0 0.0
  %835 = vmatprep.mubr.f32.mxu0 0.0
  %836 = vmatmul.mubr.f32.gmra.mxu0 %v754
  %v837 = vpop.f32.mrf.mxu0
  %v838 = vadd.f32 0.0, %v837
  %v839 = vpop.f32.mrf.mxu0
  %840 = vdwg.mxu0
  %v841 = vadd.f32 %v753, %v838
  %v842 = vld [vmem:[%s3] sm:$0x1]
  %v844 = vlaneseq
  %v845 = vshrl.u32 %v844, 7
  %v846 = vsub.s32 0, %v845
  %v847 = vrot.slane %v842, %v846
  %v849 = vadd.f32 %v841, %v847
  %v850 = vtanh.pop %v849
  %851 = vst [vmem:[#allocation2] sm:$0xff] %v850
  %v852 = vpack.c.bf16 %v850, %v850
  %s853 = scalar_lea.vmem %s4, 28
  %854 = vst [vmem:[%s853] sm:$0xf] %v852
  %v855 = vld [vmem:[#allocation2] sm:$0xff]
  %856 = vst [vmem:[%s5] sm:$0xff] %v855
  // Predicated region
  $region22: #{rnn_model_forward.2} parent=0 // pred_check
    _
  $region23: #{rnn_model_forward.2} parent=0 // pred_check_branch
    %858 = sbr.rel (0) target = $region25
  $region24: #{rnn_model_forward.2} parent=0 // pred_region
    _
  $region25: #{rnn_model_forward.2} parent=0 // pred_fallthru
    _
  // Predicated region
  $region26: #{rnn_model_forward.2} parent=0 // pred_check
    _
  $region27: #{rnn_model_forward.2} parent=0 // pred_check_branch
    %860 = sbr.rel (0) target = $region29
  $region28: #{rnn_model_forward.2} parent=0 // pred_region
    _
  $region29: #{rnn_model_forward.2} parent=0 // pred_fallthru
    _
  // Predicated region
  $region30: #{rnn_model_forward.2} parent=0 // pred_check
    _
  $region31: #{rnn_model_forward.2} parent=0 // pred_check_branch
    %862 = sbr.rel (0) target = $region33
  $region32: #{rnn_model_forward.2} parent=0 // pred_region
    _
  $region33: #{rnn_model_forward.2} parent=0 // pred_fallthru
    _
  // Predicated region
  $region34: #{rnn_model_forward.2} parent=0 // pred_check
    _
  $region35: #{rnn_model_forward.2} parent=0 // pred_check_branch
    %864 = sbr.rel (0) target = $region37
  $region36: #{rnn_model_forward.2} parent=0 // pred_region
    _
  $region37: #{rnn_model_forward.2} parent=0 // pred_fallthru
    _

</llo_original>
